<compile_context>
chip_gen: v6e
topology: v6e:2x2x1
jax: 0.10.0
libtpu: 0.0.40
codegen_flags: <defaults>
</compile_context>

<pallas_src>
import functools

import jax
import jax.numpy as jnp
from jax.experimental import pallas as pl
from jax.experimental.pallas import tpu as pltpu

LN_EPS = 1e-5          # PyTorch nn.LayerNorm default
MAX_CONTRACT = 256     # v6e/v7x MXU contraction depth (v5e splits it, no loss)


def _round_up(x, m):
    return ((x + m - 1) // m) * m


def _tap_groups(kernel_size, cin):
    """Group conv taps so each fused matmul contraction is <= MAX_CONTRACT.

    Groups are contiguous in tap order, so the last group always contains the
    un-shifted tap (j = K-1): its input is `h` itself (no shift copy), and the
    1x1 downsample can ride the same matmul when there is a single group.
    """
    g = max(1, min(kernel_size, MAX_CONTRACT // max(cin, 1)))
    groups, rem = [], kernel_size
    while rem > 0:
        take = min(g, rem)
        groups.append(take)
        rem -= take
    return tuple(groups)


# ----------------------------------------------------------------------------
# Fused kernel: all residual blocks + attention-pool head, grid over row tiles
# ----------------------------------------------------------------------------
def make_tcn_kernel(layer_cfgs, kernel_size, use_layer_norm, t_valid, out_dim,
                    fc_vpu):
    """layer_cfgs: tuple of (dilation, cin, cout, groups, has_ds, fold_ds)."""
    K = kernel_size

    def kernel(*refs):
        it = iter(refs)
        x_ref = next(it)
        layer_refs = []
        for (_dil, _cin, _cout, _groups, has_ds, fold) in layer_cfgs:
            w_ref = next(it)
            dw_ref = next(it) if (has_ds and not fold) else None
            db_ref = next(it) if has_ds else None
            layer_refs.append((w_ref, dw_ref, db_ref))
        b_ref = next(it)
        if use_layer_norm:
            g_ref = next(it)
            be_ref = next(it)
        wa_ref = next(it)
        ba_ref = next(it)
        if use_layer_norm:
            gh_ref = next(it)
            bh_ref = next(it)
        wfc_ref = next(it)
        bfc_ref = next(it)
        o_ref = next(it)

        h = x_ref[...]                                   # (nb, T, Cin) bf16
        nb, T, _ = h.shape
        cdt = h.dtype

        # ---------------- residual dilated causal conv stack -----------------
        for li, ((dil, cin, cout, groups, has_ds, fold), lrefs) in enumerate(
                zip(layer_cfgs, layer_refs)):
            w_ref, dw_ref, db_ref = lrefs
            h_flat = h.reshape(nb * T, cin)

            # Fused tap matmuls: the K dilation taps are stacked along the
            # contraction axis in groups of <= MAX_CONTRACT channels so the
            # MXU sees one deep contraction instead of K shallow ones.
            acc = None
            row0, tap0 = 0, 0
            for g in groups:
                parts = []
                for j in range(tap0, tap0 + g):
                    s = (K - 1 - j) * dil                # causal left shift
                    if s == 0:
                        parts.append(h)                  # un-shifted tap: no copy
                    elif s >= T:
                        parts.append(jnp.zeros((nb, T, cin), cdt))
                    else:
                        # shift right in time by s with zero fill (causal pad)
                        # TODO(synk): pltpu.roll + iota mask would avoid this
                        # concat copy, but is kept off for lowering safety.
                        parts.append(jnp.concatenate(
                            [jnp.zeros((nb, s, cin), cdt), h[:, :T - s, :]],
                            axis=1))
                tap0 += g
                xg = parts[0] if len(parts) == 1 else jnp.concatenate(parts, axis=-1)
                xg = xg.reshape(nb * T, g * cin)
                if g * cin == w_ref.shape[0]:
                    wg = w_ref[...]
                else:
                    wg = w_ref[pl.ds(row0, g * cin), :]
                row0 += g * cin
                part = jnp.dot(xg, wg, preferred_element_type=jnp.float32)
                acc = part if acc is None else acc + part

            # residual path
            if fold:                      # 1x1 downsample rode the fused matmul
                res = acc[:, cout:] + db_ref[...]
                acc = acc[:, :cout]
            elif has_ds:
                res = (jnp.dot(h_flat, dw_ref[...],
                               preferred_element_type=jnp.float32)
                       + db_ref[...])
            else:
                res = h_flat              # identity residual stays bf16

            acc = acc + b_ref[pl.ds(li, 1), :]           # conv bias, added once

            # LayerNorm over channels: fp32 stats, centered (safe) variance
            if use_layer_norm:
                mean = jnp.mean(acc, axis=-1, keepdims=True)
                xc = acc - mean
                var = jnp.mean(xc * xc, axis=-1, keepdims=True)
                acc = xc * jax.lax.rsqrt(var + LN_EPS)
                acc = acc * g_ref[pl.ds(li, 1), :] + be_ref[pl.ds(li, 1), :]

            # dropout = identity (eval); ReLU(out + residual); back to bf16
            h = jnp.maximum(acc + res, 0.0).astype(cdt).reshape(nb, T, cout)

        # -------------------------------- head -------------------------------
        H = h.shape[-1]
        wa = wa_ref[...].reshape(1, 1, H)                               # fp32
        # attention scores: VPU multiply + lane reduction (fp32 accumulation)
        scores = jnp.sum(h * wa, axis=-1, keepdims=True) + ba_ref[...]  # (nb,T,1)
        if t_valid < T:                   # mask timesteps added by T padding
            t_ids = jax.lax.broadcasted_iota(jnp.int32, (nb, T, 1), 1)
            scores = jnp.where(t_ids < t_valid, scores, -jnp.inf)
        m = jnp.max(scores, axis=1, keepdims=True)
        e = jnp.exp(scores - m)
        attn = e * pl.reciprocal(jnp.sum(e, axis=1, keepdims=True), approx=True)
        pooled = jnp.sum(h * attn, axis=1)                              # (nb, H)

        if use_layer_norm:
            mean = jnp.mean(pooled, axis=-1, keepdims=True)
            xc = pooled - mean
            var = jnp.mean(xc * xc, axis=-1, keepdims=True)
            pooled = xc * jax.lax.rsqrt(var + LN_EPS)
            pooled = pooled * gh_ref[...] + bh_ref[...]

        # dropout = identity (eval); final Linear
        if fc_vpu:  # tiny O: VPU multiply + lane reduce (wfc passed transposed)
            cols = [jnp.sum(pooled * wfc_ref[pl.ds(o, 1), :],
                            axis=-1, keepdims=True) for o in range(out_dim)]
            out = cols[0] if out_dim == 1 else jnp.concatenate(cols, axis=-1)
            out = out + bfc_ref[...]
        else:
            out = (jnp.dot(pooled.astype(wfc_ref.dtype), wfc_ref[...],
                           preferred_element_type=jnp.float32) + bfc_ref[...])
        o_ref[...] = out.astype(o_ref.dtype)

    return kernel


# ----------------------------------------------------------------------------
# Wrapper
# ----------------------------------------------------------------------------
def _full_spec(shape):
    zeros = (0,) * len(shape)
    return pl.BlockSpec(tuple(shape), lambda n, _z=zeros: _z)


def _vmem_budget():
    """Generation-aware (working-set target, vmem_limit_bytes, two_tensorcores)."""
    try:
        cap = int(getattr(pltpu.get_tpu_info(), "vmem_capacity_bytes", 0) or 0)
    except Exception:
        cap = 0
    if cap and cap <= 96 * 1024 * 1024:        # v7x: 64 MiB / TensorCore, 2 TCs
        return 14 * 1024 * 1024, 48 * 1024 * 1024, True
    # v5e / v6e: 128 MiB VMEM, single TensorCore
    return 28 * 1024 * 1024, 100 * 1024 * 1024, False


def _choose_row_block(n_rows, T, cmax, kernel_size, budget_bytes, two_tc):
    """Rows per grid step: biggest tile whose live working set fits the budget."""
    per_rowt = (4 * cmax * 2                                   # bf16 activations
                + min(MAX_CONTRACT, kernel_size * cmax) * 2    # fused-tap stack
                + 3 * cmax * 4)                                # fp32 acc/LN/temps
    per_row = T * per_rowt + 512
    nb = max(8, (budget_bytes // max(per_row, 1)) // 8 * 8)
    nb = min(nb, 1024)
    if two_tc and n_rows >= 16:
        # make sure both v7x TensorCores get work
        nb = min(nb, _round_up(-(-n_rows // 2), 8))
    nb = min(nb, _round_up(n_rows, 8))
    steps = -(-n_rows // nb)
    if two_tc and steps > 1 and steps % 2 == 1:
        steps += 1                                 # balance the two TensorCores
        nb = max(8, _round_up(-(-n_rows // steps), 8))
    return nb


def tcn_forward(x, params, *, kernel_size, use_layer_norm=True,
                compute_dtype=jnp.bfloat16):
    B, A, T, C = x.shape
    N = B * A
    hidden = params["blocks"][0]["w"].shape[-1]
    O = params["head"]["wfc"].shape[-1]
    L = len(params["blocks"])

    budget, vmem_limit, two_tc = _vmem_budget()
    T_pad = _round_up(T, 16)                      # bf16 sublane packing
    nb = _choose_row_block(N, T_pad, max(C, hidden), kernel_size, budget, two_tc)
    n_pad = _round_up(N, nb)

    h = x.reshape(N, T, C).astype(compute_dtype)
    if n_pad != N or T_pad != T:
        # zero rows / timesteps are harmless (masked or sliced away)
        h = jnp.pad(h, ((0, n_pad - N), (0, T_pad - T), (0, 0)))

    args = [h]
    in_specs = [pl.BlockSpec((nb, T_pad, C), lambda n: (n, 0, 0))]

    layer_cfgs = []
    flops = 0
    bytes_accessed = h.size * h.dtype.itemsize + n_pad * O * 4

    cin = C
    for i, blk in enumerate(params["blocks"]):
        dil = 2 ** i
        has_ds = cin != hidden
        groups = _tap_groups(kernel_size, cin)
        fold = has_ds and len(groups) == 1        # fold 1x1 downsample into matmul

        w2 = blk["w"].reshape(kernel_size * cin, hidden)
        if fold:
            dw_block = jnp.concatenate(
                [jnp.zeros(((kernel_size - 1) * cin, hidden), w2.dtype),
                 blk["dw"]], axis=0)
            w2 = jnp.concatenate([w2, dw_block], axis=1)     # (K*cin, 2*hidden)
        w2 = w2.astype(compute_dtype)
        args.append(w2)
        in_specs.append(_full_spec(w2.shape))
        bytes_accessed += w2.size * w2.dtype.itemsize
        flops += 2 * N * T * kernel_size * cin * hidden
        if has_ds:
            if not fold:
                dw = blk["dw"].astype(compute_dtype)
                args.append(dw)
                in_specs.append(_full_spec(dw.shape))
                bytes_accessed += dw.size * dw.dtype.itemsize
            db = blk["db"].reshape(1, hidden).astype(jnp.float32)
            args.append(db)
            in_specs.append(_full_spec(db.shape))
            bytes_accessed += db.size * 4
            flops += 2 * N * T * cin * hidden
        layer_cfgs.append((dil, cin, hidden, groups, has_ds, fold))
        cin = hidden

    # per-layer bias / gamma / beta stacked into single inputs
    bias_stack = jnp.stack(
        [blk["b"].reshape((hidden,)) for blk in params["blocks"]]).astype(jnp.float32)
    args.append(bias_stack)
    in_specs.append(_full_spec(bias_stack.shape))
    if use_layer_norm:
        gamma_stack = jnp.stack(
            [blk["gamma"].reshape((hidden,)) for blk in params["blocks"]]).astype(jnp.float32)
        beta_stack = jnp.stack(
            [blk["beta"].reshape((hidden,)) for blk in params["blocks"]]).astype(jnp.float32)
        args += [gamma_stack, beta_stack]
        in_specs += [_full_spec(gamma_stack.shape), _full_spec(beta_stack.shape)]
    bytes_accessed += 3 * L * hidden * 4

    head = params["head"]
    fc_vpu = O <= 16
    wa = head["wa"].reshape(1, hidden).astype(jnp.float32)
    ba = head["ba"].reshape(1, 1).astype(jnp.float32)
    args += [wa, ba]
    in_specs += [_full_spec(wa.shape), _full_spec(ba.shape)]
    if use_layer_norm:
        gh = head["gamma"].reshape(1, hidden).astype(jnp.float32)
        bh = head["beta"].reshape(1, hidden).astype(jnp.float32)
        args += [gh, bh]
        in_specs += [_full_spec(gh.shape), _full_spec(bh.shape)]
    if fc_vpu:
        wfc = head["wfc"].T.astype(jnp.float32)            # (O, hidden)
    else:
        wfc = head["wfc"].astype(compute_dtype)            # (hidden, O)
    bfc = head["bfc"].reshape(1, O).astype(jnp.float32)
    args += [wfc, bfc]
    in_specs += [_full_spec(wfc.shape), _full_spec(bfc.shape)]
    bytes_accessed += wfc.size * wfc.dtype.itemsize + (3 * hidden + 1 + O) * 4
    flops += 2 * N * T * hidden          # attention scores
    flops += 2 * N * T * hidden          # attention pooling
    flops += 2 * N * hidden * O          # final fc
    transcendentals = N * T + N * T * L  # exp + rsqrt

    kernel = make_tcn_kernel(tuple(layer_cfgs), kernel_size, use_layer_norm,
                             T, O, fc_vpu)

    out = pl.pallas_call(
        kernel,
        out_shape=jax.ShapeDtypeStruct((n_pad, O), jnp.float32),
        grid=(n_pad // nb,),
        in_specs=in_specs,
        out_specs=pl.BlockSpec((nb, O), lambda n: (n, 0)),
        compiler_params=pltpu.CompilerParams(
            dimension_semantics=("parallel",),
            vmem_limit_bytes=vmem_limit),
        cost_estimate=pl.CostEstimate(
            flops=int(flops), transcendentals=int(transcendentals),
            bytes_accessed=int(bytes_accessed)),
    )(*args)

    out = out[:N].reshape(B, A, O)
    if O == 1:
        out = out[..., 0]
    return out


# ----------------------------------------------------------------------------
# Parameters + pure-JAX reference (for a correctness check)
# ----------------------------------------------------------------------------
def init_params(key, in_channels, hidden, kernel_size, num_layers, output_dim):
    params = {"blocks": []}
    for i in range(num_layers):
        cin = in_channels if i == 0 else hidden
        key, k1, k2 = jax.random.split(key, 3)
        blk = {
            "w": jax.random.normal(k1, (kernel_size, cin, hidden), jnp.float32) * 0.1,
            "b": jax.random.normal(k2, (1, hidden), jnp.float32) * 0.1,
            "gamma": jnp.ones((1, hidden), jnp.float32),
            "beta": jnp.zeros((1, hidden), jnp.float32),
        }
        if cin != hidden:
            key, k3, k4 = jax.random.split(key, 3)
            blk["dw"] = jax.random.normal(k3, (cin, hidden), jnp.float32) * 0.1
            blk["db"] = jax.random.normal(k4, (1, hidden), jnp.float32) * 0.1
        params["blocks"].append(blk)
    key, k1, k2, k3, k4 = jax.random.split(key, 5)
    params["head"] = {
        "wa": jax.random.normal(k1, (1, hidden), jnp.float32) * 0.1,
        "ba": jax.random.normal(k2, (1, 1), jnp.float32) * 0.1,
        "gamma": jnp.ones((1, hidden), jnp.float32),
        "beta": jnp.zeros((1, hidden), jnp.float32),
        "wfc": jax.random.normal(k3, (hidden, output_dim), jnp.float32) * 0.1,
        "bfc": jax.random.normal(k4, (1, output_dim), jnp.float32) * 0.1,
    }
    return params


def tcn_reference(x, params, *, kernel_size, use_layer_norm=True):
    B, A, T, C = x.shape
    h = x.reshape(B * A, T, C)
    for i, blk in enumerate(params["blocks"]):
        d = 2 ** i
        pad = (kernel_size - 1) * d
        hp = jnp.pad(h, ((0, 0), (pad, 0), (0, 0)))
        acc = jnp.zeros(h.shape[:2] + (blk["w"].shape[-1],), jnp.float32) + blk["b"]
        for j in range(kernel_size):
            acc = acc + jnp.einsum("ntc,co->nto", hp[:, j * d: j * d + T, :], blk["w"][j])
        res = (jnp.einsum("ntc,co->nto", h, blk["dw"]) + blk["db"]) if "dw" in blk else h
        if use_layer_norm:
            mean = acc.mean(-1, keepdims=True)
            var = ((acc - mean) ** 2).mean(-1, keepdims=True)
            acc = (acc - mean) / jnp.sqrt(var + LN_EPS) * blk["gamma"] + blk["beta"]
        h = jax.nn.relu(acc + res)
    head = params["head"]
    scores = jnp.einsum("nth,h->nt", h, head["wa"][0]) + head["ba"][0, 0]
    attn = jax.nn.softmax(scores, axis=1)
    pooled = jnp.einsum("nth,nt->nh", h, attn)
    if use_layer_norm:
        mean = pooled.mean(-1, keepdims=True)
        var = ((pooled - mean) ** 2).mean(-1, keepdims=True)
        pooled = (pooled - mean) / jnp.sqrt(var + LN_EPS) * head["gamma"] + head["beta"]
    out = pooled @ head["wfc"] + head["bfc"]
    out = out.reshape(B, A, -1)
    if out.shape[-1] == 1:
        out = out[..., 0]
    return out


if __name__ == "__main__":
    # small config: in_channels=4, hidden=32, kernel_size=3, num_layers=2, output_dim=3
    B, A, T, C = 2, 3, 16, 4
    HIDDEN, K, LAYERS, OUT = 32, 3, 2, 3

    key = jax.random.PRNGKey(0)
    key, kx = jax.random.split(key)
    x = jax.random.normal(kx, (B, A, T, C), jnp.float32)
    params = init_params(key, C, HIDDEN, K, LAYERS, OUT)

    fwd = jax.jit(functools.partial(tcn_forward, kernel_size=K, use_layer_norm=True))
    out = fwd(x, params)
    jax.block_until_ready(out)
    assert out.shape == (B, A, OUT), out.shape

    ref = tcn_reference(x, params, kernel_size=K, use_layer_norm=True)
    err = float(jnp.max(jnp.abs(out - ref)))
    assert err < 5e-2, f"max abs error {err}"
    print("KERNEL_OK")
</pallas_src>

<mosaic_0001>
module attributes {stable_mosaic.version = 11 : i64} {
  func.func @kernel(%arg0: i32, %arg1: memref<8x16x4xbf16, #tpu.memory_space<vmem>>, %arg2: memref<12x64xbf16, #tpu.memory_space<vmem>>, %arg3: memref<1x32xf32, #tpu.memory_space<vmem>>, %arg4: memref<96x32xbf16, #tpu.memory_space<vmem>>, %arg5: memref<2x32xf32, #tpu.memory_space<vmem>>, %arg6: memref<2x32xf32, #tpu.memory_space<vmem>>, %arg7: memref<2x32xf32, #tpu.memory_space<vmem>>, %arg8: memref<1x32xf32, #tpu.memory_space<vmem>>, %arg9: memref<1x1xf32, #tpu.memory_space<vmem>>, %arg10: memref<1x32xf32, #tpu.memory_space<vmem>>, %arg11: memref<1x32xf32, #tpu.memory_space<vmem>>, %arg12: memref<3x32xf32, #tpu.memory_space<vmem>>, %arg13: memref<1x3xf32, #tpu.memory_space<vmem>>, %arg14: memref<8x3xf32, #tpu.memory_space<vmem>>) attributes {dimension_semantics = [#tpu.dimension_semantics<parallel>], iteration_bounds = array<i64: 1>, scalar_prefetch = 0 : i64, scratch_operands = 0 : i64, tpu.core_type = #tpu.core_type<tc>, window_params = [{transform_indices = @transform_0, window_bounds = array<i64: 8, 16, 4>}, {pipeline_mode = #tpu.pipeline_mode<synchronous>, transform_indices = @transform_1, window_bounds = array<i64: 12, 64>}, {pipeline_mode = #tpu.pipeline_mode<synchronous>, transform_indices = @transform_2, window_bounds = array<i64: 1, 32>}, {pipeline_mode = #tpu.pipeline_mode<synchronous>, transform_indices = @transform_3, window_bounds = array<i64: 96, 32>}, {pipeline_mode = #tpu.pipeline_mode<synchronous>, transform_indices = @transform_4, window_bounds = array<i64: 2, 32>}, {pipeline_mode = #tpu.pipeline_mode<synchronous>, transform_indices = @transform_5, window_bounds = array<i64: 2, 32>}, {pipeline_mode = #tpu.pipeline_mode<synchronous>, transform_indices = @transform_6, window_bounds = array<i64: 2, 32>}, {pipeline_mode = #tpu.pipeline_mode<synchronous>, transform_indices = @transform_7, window_bounds = array<i64: 1, 32>}, {pipeline_mode = #tpu.pipeline_mode<synchronous>, transform_indices = @transform_8, window_bounds = array<i64: 1, 1>}, {pipeline_mode = #tpu.pipeline_mode<synchronous>, transform_indices = @transform_9, window_bounds = array<i64: 1, 32>}, {pipeline_mode = #tpu.pipeline_mode<synchronous>, transform_indices = @transform_10, window_bounds = array<i64: 1, 32>}, {pipeline_mode = #tpu.pipeline_mode<synchronous>, transform_indices = @transform_11, window_bounds = array<i64: 3, 32>}, {pipeline_mode = #tpu.pipeline_mode<synchronous>, transform_indices = @transform_12, window_bounds = array<i64: 1, 3>}, {transform_indices = @transform_13, window_bounds = array<i64: 8, 3>}]} {
    %c0 = arith.constant 0 : index
    %c0_0 = arith.constant 0 : index
    %c0_1 = arith.constant 0 : index
    %0 = vector.load %arg1[%c0, %c0_0, %c0_1] : memref<8x16x4xbf16, #tpu.memory_space<vmem>>, vector<8x16x4xbf16>
    %cst = arith.constant 0.000000e+00 : bf16
    %1 = vector.broadcast %cst : bf16 to vector<8x2x4xbf16>
    %2 = vector.extract_strided_slice %0 {offsets = [0, 0, 0], sizes = [8, 14, 4], strides = [1, 1, 1]} : vector<8x16x4xbf16> to vector<8x14x4xbf16>
    %3 = tpu.concatenate %1, %2 in 1 : vector<8x2x4xbf16>, vector<8x14x4xbf16> -> vector<8x16x4xbf16>
    %cst_2 = arith.constant 0.000000e+00 : bf16
    %4 = vector.broadcast %cst_2 : bf16 to vector<8x1x4xbf16>
    %5 = vector.extract_strided_slice %0 {offsets = [0, 0, 0], sizes = [8, 15, 4], strides = [1, 1, 1]} : vector<8x16x4xbf16> to vector<8x15x4xbf16>
    %6 = tpu.concatenate %4, %5 in 1 : vector<8x1x4xbf16>, vector<8x15x4xbf16> -> vector<8x16x4xbf16>
    %7 = tpu.concatenate %3, %6, %0 in 2 : vector<8x16x4xbf16>, vector<8x16x4xbf16>, vector<8x16x4xbf16> -> vector<8x16x12xbf16>
    %8 = vector.shape_cast %7 : vector<8x16x12xbf16> to vector<128x12xbf16>
    %c0_3 = arith.constant 0 : index
    %c0_4 = arith.constant 0 : index
    %9 = vector.load %arg2[%c0_3, %c0_4] : memref<12x64xbf16, #tpu.memory_space<vmem>>, vector<12x64xbf16>
    %cst_5 = arith.constant dense<0.000000e+00> : vector<128x64xf32>
    %10 = tpu.matmul %8, %9, %cst_5 {dimension_numbers = #tpu.dot_dimension_numbers<[1], [0], [0], [1], [0, 0, 1, 1], [], []>} : vector<128x12xbf16>, vector<12x64xbf16>, vector<128x64xf32> -> vector<128x64xf32>
    %11 = vector.extract_strided_slice %10 {offsets = [0, 32], sizes = [128, 32], strides = [1, 1]} : vector<128x64xf32> to vector<128x32xf32>
    %c0_6 = arith.constant 0 : index
    %c0_7 = arith.constant 0 : index
    %12 = vector.load %arg3[%c0_6, %c0_7] : memref<1x32xf32, #tpu.memory_space<vmem>>, vector<1x32xf32>
    %13 = vector.broadcast %12 : vector<1x32xf32> to vector<128x32xf32>
    %14 = arith.addf %11, %13 : vector<128x32xf32>
    %15 = vector.extract_strided_slice %10 {offsets = [0, 0], sizes = [128, 32], strides = [1, 1]} : vector<128x64xf32> to vector<128x32xf32>
    %c0_8 = arith.constant 0 : index
    %c0_9 = arith.constant 0 : index
    %16 = vector.load %arg5[%c0_8, %c0_9] : memref<2x32xf32, #tpu.memory_space<vmem>>, vector<1x32xf32>
    %17 = vector.broadcast %16 : vector<1x32xf32> to vector<128x32xf32>
    %18 = arith.addf %15, %17 : vector<128x32xf32>
    %cst_10 = arith.constant dense<0.000000e+00> : vector<128xf32>
    %19 = vector.multi_reduction <add>, %18, %cst_10 [1] : vector<128x32xf32> to vector<128xf32>
    %20 = vector.shape_cast %19 : vector<128xf32> to vector<128x1xf32>
    %cst_11 = arith.constant 3.200000e+01 : f32
    %21 = vector.broadcast %cst_11 : f32 to vector<128x1xf32>
    %22 = arith.divf %20, %21 : vector<128x1xf32>
    %23 = vector.broadcast %22 : vector<128x1xf32> to vector<128x32xf32>
    %24 = arith.subf %18, %23 : vector<128x32xf32>
    %25 = arith.mulf %24, %24 : vector<128x32xf32>
    %cst_12 = arith.constant dense<0.000000e+00> : vector<128xf32>
    %26 = vector.multi_reduction <add>, %25, %cst_12 [1] : vector<128x32xf32> to vector<128xf32>
    %27 = vector.shape_cast %26 : vector<128xf32> to vector<128x1xf32>
    %cst_13 = arith.constant 3.200000e+01 : f32
    %28 = vector.broadcast %cst_13 : f32 to vector<128x1xf32>
    %29 = arith.divf %27, %28 : vector<128x1xf32>
    %cst_14 = arith.constant 9.99999974E-6 : f32
    %30 = vector.broadcast %cst_14 : f32 to vector<128x1xf32>
    %31 = arith.addf %29, %30 : vector<128x1xf32>
    %32 = math.rsqrt %31 : vector<128x1xf32>
    %33 = vector.broadcast %32 : vector<128x1xf32> to vector<128x32xf32>
    %34 = arith.mulf %24, %33 : vector<128x32xf32>
    %c0_15 = arith.constant 0 : index
    %c0_16 = arith.constant 0 : index
    %35 = vector.load %arg6[%c0_15, %c0_16] : memref<2x32xf32, #tpu.memory_space<vmem>>, vector<1x32xf32>
    %36 = vector.broadcast %35 : vector<1x32xf32> to vector<128x32xf32>
    %37 = arith.mulf %34, %36 : vector<128x32xf32>
    %c0_17 = arith.constant 0 : index
    %c0_18 = arith.constant 0 : index
    %38 = vector.load %arg7[%c0_17, %c0_18] : memref<2x32xf32, #tpu.memory_space<vmem>>, vector<1x32xf32>
    %39 = vector.broadcast %38 : vector<1x32xf32> to vector<128x32xf32>
    %40 = arith.addf %37, %39 : vector<128x32xf32>
    %41 = arith.addf %40, %14 : vector<128x32xf32>
    %cst_19 = arith.constant 0.000000e+00 : f32
    %42 = vector.broadcast %cst_19 : f32 to vector<128x32xf32>
    %43 = arith.maximumf %41, %42 : vector<128x32xf32>
    %44 = arith.truncf %43 : vector<128x32xf32> to vector<128x32xbf16>
    %45 = vector.shape_cast %44 : vector<128x32xbf16> to vector<8x16x32xbf16>
    %46 = vector.shape_cast %45 : vector<8x16x32xbf16> to vector<128x32xbf16>
    %cst_20 = arith.constant 0.000000e+00 : bf16
    %47 = vector.broadcast %cst_20 : bf16 to vector<8x4x32xbf16>
    %48 = vector.extract_strided_slice %45 {offsets = [0, 0, 0], sizes = [8, 12, 32], strides = [1, 1, 1]} : vector<8x16x32xbf16> to vector<8x12x32xbf16>
    %49 = tpu.concatenate %47, %48 in 1 : vector<8x4x32xbf16>, vector<8x12x32xbf16> -> vector<8x16x32xbf16>
    %cst_21 = arith.constant 0.000000e+00 : bf16
    %50 = vector.broadcast %cst_21 : bf16 to vector<8x2x32xbf16>
    %51 = vector.extract_strided_slice %45 {offsets = [0, 0, 0], sizes = [8, 14, 32], strides = [1, 1, 1]} : vector<8x16x32xbf16> to vector<8x14x32xbf16>
    %52 = tpu.concatenate %50, %51 in 1 : vector<8x2x32xbf16>, vector<8x14x32xbf16> -> vector<8x16x32xbf16>
    %53 = tpu.concatenate %49, %52, %45 in 2 : vector<8x16x32xbf16>, vector<8x16x32xbf16>, vector<8x16x32xbf16> -> vector<8x16x96xbf16>
    %54 = vector.shape_cast %53 : vector<8x16x96xbf16> to vector<128x96xbf16>
    %c0_22 = arith.constant 0 : index
    %c0_23 = arith.constant 0 : index
    %55 = vector.load %arg4[%c0_22, %c0_23] : memref<96x32xbf16, #tpu.memory_space<vmem>>, vector<96x32xbf16>
    %cst_24 = arith.constant dense<0.000000e+00> : vector<128x32xf32>
    %56 = tpu.matmul %54, %55, %cst_24 {dimension_numbers = #tpu.dot_dimension_numbers<[1], [0], [0], [1], [0, 0, 1, 1], [], []>} : vector<128x96xbf16>, vector<96x32xbf16>, vector<128x32xf32> -> vector<128x32xf32>
    %c1 = arith.constant 1 : index
    %c0_25 = arith.constant 0 : index
    %57 = vector.load %arg5[%c1, %c0_25] : memref<2x32xf32, #tpu.memory_space<vmem>>, vector<1x32xf32>
    %58 = vector.broadcast %57 : vector<1x32xf32> to vector<128x32xf32>
    %59 = arith.addf %56, %58 : vector<128x32xf32>
    %cst_26 = arith.constant dense<0.000000e+00> : vector<128xf32>
    %60 = vector.multi_reduction <add>, %59, %cst_26 [1] : vector<128x32xf32> to vector<128xf32>
    %61 = vector.shape_cast %60 : vector<128xf32> to vector<128x1xf32>
    %cst_27 = arith.constant 3.200000e+01 : f32
    %62 = vector.broadcast %cst_27 : f32 to vector<128x1xf32>
    %63 = arith.divf %61, %62 : vector<128x1xf32>
    %64 = vector.broadcast %63 : vector<128x1xf32> to vector<128x32xf32>
    %65 = arith.subf %59, %64 : vector<128x32xf32>
    %66 = arith.mulf %65, %65 : vector<128x32xf32>
    %cst_28 = arith.constant dense<0.000000e+00> : vector<128xf32>
    %67 = vector.multi_reduction <add>, %66, %cst_28 [1] : vector<128x32xf32> to vector<128xf32>
    %68 = vector.shape_cast %67 : vector<128xf32> to vector<128x1xf32>
    %cst_29 = arith.constant 3.200000e+01 : f32
    %69 = vector.broadcast %cst_29 : f32 to vector<128x1xf32>
    %70 = arith.divf %68, %69 : vector<128x1xf32>
    %cst_30 = arith.constant 9.99999974E-6 : f32
    %71 = vector.broadcast %cst_30 : f32 to vector<128x1xf32>
    %72 = arith.addf %70, %71 : vector<128x1xf32>
    %73 = math.rsqrt %72 : vector<128x1xf32>
    %74 = vector.broadcast %73 : vector<128x1xf32> to vector<128x32xf32>
    %75 = arith.mulf %65, %74 : vector<128x32xf32>
    %c1_31 = arith.constant 1 : index
    %c0_32 = arith.constant 0 : index
    %76 = vector.load %arg6[%c1_31, %c0_32] : memref<2x32xf32, #tpu.memory_space<vmem>>, vector<1x32xf32>
    %77 = vector.broadcast %76 : vector<1x32xf32> to vector<128x32xf32>
    %78 = arith.mulf %75, %77 : vector<128x32xf32>
    %c1_33 = arith.constant 1 : index
    %c0_34 = arith.constant 0 : index
    %79 = vector.load %arg7[%c1_33, %c0_34] : memref<2x32xf32, #tpu.memory_space<vmem>>, vector<1x32xf32>
    %80 = vector.broadcast %79 : vector<1x32xf32> to vector<128x32xf32>
    %81 = arith.addf %78, %80 : vector<128x32xf32>
    %82 = arith.extf %46 : vector<128x32xbf16> to vector<128x32xf32>
    %83 = arith.addf %81, %82 : vector<128x32xf32>
    %cst_35 = arith.constant 0.000000e+00 : f32
    %84 = vector.broadcast %cst_35 : f32 to vector<128x32xf32>
    %85 = arith.maximumf %83, %84 : vector<128x32xf32>
    %86 = arith.truncf %85 : vector<128x32xf32> to vector<128x32xbf16>
    %87 = vector.shape_cast %86 : vector<128x32xbf16> to vector<8x16x32xbf16>
    %c0_36 = arith.constant 0 : index
    %c0_37 = arith.constant 0 : index
    %88 = vector.load %arg8[%c0_36, %c0_37] : memref<1x32xf32, #tpu.memory_space<vmem>>, vector<1x32xf32>
    %89 = vector.shape_cast %88 : vector<1x32xf32> to vector<1x1x32xf32>
    %90 = arith.extf %87 : vector<8x16x32xbf16> to vector<8x16x32xf32>
    %91 = vector.broadcast %89 : vector<1x1x32xf32> to vector<8x16x32xf32>
    %92 = arith.mulf %90, %91 : vector<8x16x32xf32>
    %cst_38 = arith.constant dense<0.000000e+00> : vector<8x16xf32>
    %93 = vector.multi_reduction <add>, %92, %cst_38 [2] : vector<8x16x32xf32> to vector<8x16xf32>
    %94 = vector.shape_cast %93 : vector<8x16xf32> to vector<8x16x1xf32>
    %c0_39 = arith.constant 0 : index
    %c0_40 = arith.constant 0 : index
    %95 = vector.load %arg9[%c0_39, %c0_40] : memref<1x1xf32, #tpu.memory_space<vmem>>, vector<1x1xf32>
    %96 = vector.shape_cast %95 : vector<1x1xf32> to vector<1x1x1xf32>
    %97 = vector.broadcast %96 : vector<1x1x1xf32> to vector<8x16x1xf32>
    %98 = arith.addf %94, %97 : vector<8x16x1xf32>
    %cst_41 = arith.constant dense<0xFF800000> : vector<8x1xf32>
    %99 = vector.multi_reduction <maximumf>, %98, %cst_41 [1] : vector<8x16x1xf32> to vector<8x1xf32>
    %100 = vector.shape_cast %99 : vector<8x1xf32> to vector<8x1x1xf32>
    %101 = vector.broadcast %100 : vector<8x1x1xf32> to vector<8x16x1xf32>
    %102 = arith.subf %98, %101 : vector<8x16x1xf32>
    %103 = math.exp %102 : vector<8x16x1xf32>
    %cst_42 = arith.constant dense<0.000000e+00> : vector<8x1xf32>
    %104 = vector.multi_reduction <add>, %103, %cst_42 [1] : vector<8x16x1xf32> to vector<8x1xf32>
    %105 = vector.shape_cast %104 : vector<8x1xf32> to vector<8x1x1xf32>
    %106 = tpu.reciprocal %105 {approx = true} : vector<8x1x1xf32> -> vector<8x1x1xf32>
    %107 = vector.broadcast %106 : vector<8x1x1xf32> to vector<8x16x1xf32>
    %108 = arith.mulf %103, %107 : vector<8x16x1xf32>
    %109 = arith.extf %87 : vector<8x16x32xbf16> to vector<8x16x32xf32>
    %110 = vector.broadcast %108 : vector<8x16x1xf32> to vector<8x16x32xf32>
    %111 = arith.mulf %109, %110 : vector<8x16x32xf32>
    %cst_43 = arith.constant dense<0.000000e+00> : vector<8x32xf32>
    %112 = vector.multi_reduction <add>, %111, %cst_43 [1] : vector<8x16x32xf32> to vector<8x32xf32>
    %cst_44 = arith.constant dense<0.000000e+00> : vector<8xf32>
    %113 = vector.multi_reduction <add>, %112, %cst_44 [1] : vector<8x32xf32> to vector<8xf32>
    %114 = vector.shape_cast %113 : vector<8xf32> to vector<8x1xf32>
    %cst_45 = arith.constant 3.200000e+01 : f32
    %115 = vector.broadcast %cst_45 : f32 to vector<8x1xf32>
    %116 = arith.divf %114, %115 : vector<8x1xf32>
    %117 = vector.broadcast %116 : vector<8x1xf32> to vector<8x32xf32>
    %118 = arith.subf %112, %117 : vector<8x32xf32>
    %119 = arith.mulf %118, %118 : vector<8x32xf32>
    %cst_46 = arith.constant dense<0.000000e+00> : vector<8xf32>
    %120 = vector.multi_reduction <add>, %119, %cst_46 [1] : vector<8x32xf32> to vector<8xf32>
    %121 = vector.shape_cast %120 : vector<8xf32> to vector<8x1xf32>
    %cst_47 = arith.constant 3.200000e+01 : f32
    %122 = vector.broadcast %cst_47 : f32 to vector<8x1xf32>
    %123 = arith.divf %121, %122 : vector<8x1xf32>
    %cst_48 = arith.constant 9.99999974E-6 : f32
    %124 = vector.broadcast %cst_48 : f32 to vector<8x1xf32>
    %125 = arith.addf %123, %124 : vector<8x1xf32>
    %126 = math.rsqrt %125 : vector<8x1xf32>
    %127 = vector.broadcast %126 : vector<8x1xf32> to vector<8x32xf32>
    %128 = arith.mulf %118, %127 : vector<8x32xf32>
    %c0_49 = arith.constant 0 : index
    %c0_50 = arith.constant 0 : index
    %129 = vector.load %arg10[%c0_49, %c0_50] : memref<1x32xf32, #tpu.memory_space<vmem>>, vector<1x32xf32>
    %130 = vector.broadcast %129 : vector<1x32xf32> to vector<8x32xf32>
    %131 = arith.mulf %128, %130 : vector<8x32xf32>
    %c0_51 = arith.constant 0 : index
    %c0_52 = arith.constant 0 : index
    %132 = vector.load %arg11[%c0_51, %c0_52] : memref<1x32xf32, #tpu.memory_space<vmem>>, vector<1x32xf32>
    %133 = vector.broadcast %132 : vector<1x32xf32> to vector<8x32xf32>
    %134 = arith.addf %131, %133 : vector<8x32xf32>
    %c0_53 = arith.constant 0 : index
    %c0_54 = arith.constant 0 : index
    %135 = vector.load %arg12[%c0_53, %c0_54] : memref<3x32xf32, #tpu.memory_space<vmem>>, vector<1x32xf32>
    %136 = vector.broadcast %135 : vector<1x32xf32> to vector<8x32xf32>
    %137 = arith.mulf %134, %136 : vector<8x32xf32>
    %cst_55 = arith.constant dense<0.000000e+00> : vector<8xf32>
    %138 = vector.multi_reduction <add>, %137, %cst_55 [1] : vector<8x32xf32> to vector<8xf32>
    %139 = vector.shape_cast %138 : vector<8xf32> to vector<8x1xf32>
    %c1_56 = arith.constant 1 : index
    %c0_57 = arith.constant 0 : index
    %140 = vector.load %arg12[%c1_56, %c0_57] : memref<3x32xf32, #tpu.memory_space<vmem>>, vector<1x32xf32>
    %141 = vector.broadcast %140 : vector<1x32xf32> to vector<8x32xf32>
    %142 = arith.mulf %134, %141 : vector<8x32xf32>
    %cst_58 = arith.constant dense<0.000000e+00> : vector<8xf32>
    %143 = vector.multi_reduction <add>, %142, %cst_58 [1] : vector<8x32xf32> to vector<8xf32>
    %144 = vector.shape_cast %143 : vector<8xf32> to vector<8x1xf32>
    %c2 = arith.constant 2 : index
    %c0_59 = arith.constant 0 : index
    %145 = vector.load %arg12[%c2, %c0_59] : memref<3x32xf32, #tpu.memory_space<vmem>>, vector<1x32xf32>
    %146 = vector.broadcast %145 : vector<1x32xf32> to vector<8x32xf32>
    %147 = arith.mulf %134, %146 : vector<8x32xf32>
    %cst_60 = arith.constant dense<0.000000e+00> : vector<8xf32>
    %148 = vector.multi_reduction <add>, %147, %cst_60 [1] : vector<8x32xf32> to vector<8xf32>
    %149 = vector.shape_cast %148 : vector<8xf32> to vector<8x1xf32>
    %150 = tpu.concatenate %139, %144, %149 in 1 : vector<8x1xf32>, vector<8x1xf32>, vector<8x1xf32> -> vector<8x3xf32>
    %c0_61 = arith.constant 0 : index
    %c0_62 = arith.constant 0 : index
    %151 = vector.load %arg13[%c0_61, %c0_62] : memref<1x3xf32, #tpu.memory_space<vmem>>, vector<1x3xf32>
    %152 = vector.broadcast %151 : vector<1x3xf32> to vector<8x3xf32>
    %153 = arith.addf %150, %152 : vector<8x3xf32>
    %c0_63 = arith.constant 0 : index
    %c0_64 = arith.constant 0 : index
    %154 = vector.load %arg14[%c0_63, %c0_64] : memref<8x3xf32, #tpu.memory_space<vmem>>, vector<8x3xf32>
    tpu.vector_store %arg14[%c0_63, %c0_64], %153 {strides = array<i32>} : memref<8x3xf32, #tpu.memory_space<vmem>>, vector<8x3xf32>,
    return
  }
  func.func @transform_0(%arg0: i32) -> (i32, i32, i32) {
    %c0_i32 = arith.constant 0 : i32
    %c0_i32_0 = arith.constant 0 : i32
    %c0_i32_1 = arith.constant 0 : i32
    return %arg0, %c0_i32, %c0_i32_0 : i32, i32, i32
  }
  func.func @transform_1(%arg0: i32) -> (i32, i32) {
    %c0_i32 = arith.constant 0 : i32
    %c0_i32_0 = arith.constant 0 : i32
    %c0_i32_1 = arith.constant 0 : i32
    return %c0_i32, %c0_i32_0 : i32, i32
  }
  func.func @transform_2(%arg0: i32) -> (i32, i32) {
    %c0_i32 = arith.constant 0 : i32
    %c0_i32_0 = arith.constant 0 : i32
    %c0_i32_1 = arith.constant 0 : i32
    return %c0_i32, %c0_i32_0 : i32, i32
  }
  func.func @transform_3(%arg0: i32) -> (i32, i32) {
    %c0_i32 = arith.constant 0 : i32
    %c0_i32_0 = arith.constant 0 : i32
    %c0_i32_1 = arith.constant 0 : i32
    return %c0_i32, %c0_i32_0 : i32, i32
  }
  func.func @transform_4(%arg0: i32) -> (i32, i32) {
    %c0_i32 = arith.constant 0 : i32
    %c0_i32_0 = arith.constant 0 : i32
    %c0_i32_1 = arith.constant 0 : i32
    return %c0_i32, %c0_i32_0 : i32, i32
  }
  func.func @transform_5(%arg0: i32) -> (i32, i32) {
    %c0_i32 = arith.constant 0 : i32
    %c0_i32_0 = arith.constant 0 : i32
    %c0_i32_1 = arith.constant 0 : i32
    return %c0_i32, %c0_i32_0 : i32, i32
  }
  func.func @transform_6(%arg0: i32) -> (i32, i32) {
    %c0_i32 = arith.constant 0 : i32
    %c0_i32_0 = arith.constant 0 : i32
    %c0_i32_1 = arith.constant 0 : i32
    return %c0_i32, %c0_i32_0 : i32, i32
  }
  func.func @transform_7(%arg0: i32) -> (i32, i32) {
    %c0_i32 = arith.constant 0 : i32
    %c0_i32_0 = arith.constant 0 : i32
    %c0_i32_1 = arith.constant 0 : i32
    return %c0_i32, %c0_i32_0 : i32, i32
  }
  func.func @transform_8(%arg0: i32) -> (i32, i32) {
    %c0_i32 = arith.constant 0 : i32
    %c0_i32_0 = arith.constant 0 : i32
    %c0_i32_1 = arith.constant 0 : i32
    return %c0_i32, %c0_i32_0 : i32, i32
  }
  func.func @transform_9(%arg0: i32) -> (i32, i32) {
    %c0_i32 = arith.constant 0 : i32
    %c0_i32_0 = arith.constant 0 : i32
    %c0_i32_1 = arith.constant 0 : i32
    return %c0_i32, %c0_i32_0 : i32, i32
  }
  func.func @transform_10(%arg0: i32) -> (i32, i32) {
    %c0_i32 = arith.constant 0 : i32
    %c0_i32_0 = arith.constant 0 : i32
    %c0_i32_1 = arith.constant 0 : i32
    return %c0_i32, %c0_i32_0 : i32, i32
  }
  func.func @transform_11(%arg0: i32) -> (i32, i32) {
    %c0_i32 = arith.constant 0 : i32
    %c0_i32_0 = arith.constant 0 : i32
    %c0_i32_1 = arith.constant 0 : i32
    return %c0_i32, %c0_i32_0 : i32, i32
  }
  func.func @transform_12(%arg0: i32) -> (i32, i32) {
    %c0_i32 = arith.constant 0 : i32
    %c0_i32_0 = arith.constant 0 : i32
    %c0_i32_1 = arith.constant 0 : i32
    return %c0_i32, %c0_i32_0 : i32, i32
  }
  func.func @transform_13(%arg0: i32) -> (i32, i32) {
    %c0_i32 = arith.constant 0 : i32
    %c0_i32_0 = arith.constant 0 : i32
    return %arg0, %c0_i32 : i32, i32
  }
}

</mosaic_0001>

<llo_original>
// kernel: tcn_forward.1
$region0: #{tcn_forward.1}
  #allocation0 [shape = 'u32[]', space=smem, size = 0x4, offset = 0x4, fixed_abs, tag = 'smem constant byte address 0x4 - core index']
  #allocation1 [shape = 'u32[144,128]{1,0:T(1,128)}', space=vmem, size = 0x12000, scoped, tag = 'internal scratch']
  #allocation2 [shape = 'f32[1,1]{1,0:T(1,128)S(1)}', space=vmem, size = 0x200, scoped, tag = 'scoped memory for tcn_forward.1']
  %s0 = inlined_call_operand.vmem [shape: bf16[8,16,4], index: 0, kind: input, shape index: {}]
  %s1 = inlined_call_operand.vmem [shape: bf16[12,64], index: 1, kind: input, shape index: {}]
  %s2 = inlined_call_operand.vmem [shape: f32[1,32], index: 2, kind: input, shape index: {}]
  %s3 = inlined_call_operand.vmem [shape: bf16[96,32], index: 3, kind: input, shape index: {}]
  %s4 = inlined_call_operand.vmem [shape: f32[2,32], index: 4, kind: input, shape index: {}]
  %s5 = inlined_call_operand.vmem [shape: f32[2,32], index: 5, kind: input, shape index: {}]
  %s6 = inlined_call_operand.vmem [shape: f32[2,32], index: 6, kind: input, shape index: {}]
  %s7 = inlined_call_operand.vmem [shape: f32[1,32], index: 7, kind: input, shape index: {}]
  %s8 = inlined_call_operand.<no memory space> [shape: f32[1,1], index: 8, kind: input, shape index: {}]
  %s9 = inlined_call_operand.vmem [shape: f32[1,32], index: 9, kind: input, shape index: {}]
  %s10 = inlined_call_operand.vmem [shape: f32[1,32], index: 10, kind: input, shape index: {}]
  %s11 = inlined_call_operand.vmem [shape: f32[3,32], index: 11, kind: input, shape index: {}]
  %s12 = inlined_call_operand.vmem [shape: f32[1,3], index: 12, kind: input, shape index: {}]
  %s13 = inlined_call_operand.vmem [shape: f32[8,3], index: 13, kind: output, shape index: {}]
  %s14 = sld [smem:[#allocation0]]
  $region62: #{tcn_forward.1} parent=0
    _
  %s16 = ssub.s32 1, %s14
  %s17 = scalar_select 0, %s16, %s14
  %v18 = vstv %s8
  %19 = vst [vmem:[#allocation2] sm:$0x1] %v18
  // Predicated region
  $region2: #{tcn_forward.1} parent=0 // pred_check
    _
  $region3: #{tcn_forward.1} parent=0 // pred_check_branch
    %21 = sbr.rel (0) target = $region5
  $region4: #{tcn_forward.1} parent=0 // pred_region
    _
  $region5: #{tcn_forward.1} parent=0 // pred_fallthru
    _
  // Predicated region
  $region6: #{tcn_forward.1} parent=0 // pred_check
    _
  $region7: #{tcn_forward.1} parent=0 // pred_check_branch
    %23 = sbr.rel (0) target = $region9
  $region8: #{tcn_forward.1} parent=0 // pred_region
    _
  $region9: #{tcn_forward.1} parent=0 // pred_fallthru
    _
  // Predicated region
  $region10: #{tcn_forward.1} parent=0 // pred_check
    _
  $region11: #{tcn_forward.1} parent=0 // pred_check_branch
    %25 = sbr.rel (0) target = $region13
  $region12: #{tcn_forward.1} parent=0 // pred_region
    _
  $region13: #{tcn_forward.1} parent=0 // pred_fallthru
    _
  // Predicated region
  $region14: #{tcn_forward.1} parent=0 // pred_check
    _
  $region15: #{tcn_forward.1} parent=0 // pred_check_branch
    %27 = sbr.rel (0) target = $region17
  $region16: #{tcn_forward.1} parent=0 // pred_region
    _
  $region17: #{tcn_forward.1} parent=0 // pred_fallthru
    _
  // Predicated region
  $region18: #{tcn_forward.1} parent=0 // pred_check
    _
  $region19: #{tcn_forward.1} parent=0 // pred_check_branch
    %29 = sbr.rel (0) target = $region21
  $region20: #{tcn_forward.1} parent=0 // pred_region
    _
  $region21: #{tcn_forward.1} parent=0 // pred_fallthru
    _
  // Predicated region
  $region22: #{tcn_forward.1} parent=0 // pred_check
    _
  $region23: #{tcn_forward.1} parent=0 // pred_check_branch
    %31 = sbr.rel (0) target = $region25
  $region24: #{tcn_forward.1} parent=0 // pred_region
    _
  $region25: #{tcn_forward.1} parent=0 // pred_fallthru
    _
  // Predicated region
  $region26: #{tcn_forward.1} parent=0 // pred_check
    _
  $region27: #{tcn_forward.1} parent=0 // pred_check_branch
    %33 = sbr.rel (0) target = $region29
  $region28: #{tcn_forward.1} parent=0 // pred_region
    _
  $region29: #{tcn_forward.1} parent=0 // pred_fallthru
    _
  // Predicated region
  $region30: #{tcn_forward.1} parent=0 // pred_check
    _
  $region31: #{tcn_forward.1} parent=0 // pred_check_branch
    %35 = sbr.rel (0) target = $region33
  $region32: #{tcn_forward.1} parent=0 // pred_region
    _
  $region33: #{tcn_forward.1} parent=0 // pred_fallthru
    _
  // Predicated region
  $region34: #{tcn_forward.1} parent=0 // pred_check
    _
  $region35: #{tcn_forward.1} parent=0 // pred_check_branch
    %37 = sbr.rel (0) target = $region37
  $region36: #{tcn_forward.1} parent=0 // pred_region
    _
  $region37: #{tcn_forward.1} parent=0 // pred_fallthru
    _
  // Predicated region
  $region38: #{tcn_forward.1} parent=0 // pred_check
    _
  $region39: #{tcn_forward.1} parent=0 // pred_check_branch
    %39 = sbr.rel (0) target = $region41
  $region40: #{tcn_forward.1} parent=0 // pred_region
    _
  $region41: #{tcn_forward.1} parent=0 // pred_fallthru
    _
  // Predicated region
  $region42: #{tcn_forward.1} parent=0 // pred_check
    _
  $region43: #{tcn_forward.1} parent=0 // pred_check_branch
    %41 = sbr.rel (0) target = $region45
  $region44: #{tcn_forward.1} parent=0 // pred_region
    _
  $region45: #{tcn_forward.1} parent=0 // pred_fallthru
    _
  // Predicated region
  $region46: #{tcn_forward.1} parent=0 // pred_check
    _
  $region47: #{tcn_forward.1} parent=0 // pred_check_branch
    %43 = sbr.rel (0) target = $region49
  $region48: #{tcn_forward.1} parent=0 // pred_region
    _
  $region49: #{tcn_forward.1} parent=0 // pred_fallthru
    _
  // Predicated region
  $region50: #{tcn_forward.1} parent=0 // pred_check
    _
  $region51: #{tcn_forward.1} parent=0 // pred_check_branch
    %45 = sbr.rel (0) target = $region53
  $region52: #{tcn_forward.1} parent=0 // pred_region
    _
  $region53: #{tcn_forward.1} parent=0 // pred_fallthru
    _
  %v47 = vld [vmem:[%s0] sm:$0xf]
  %v48 = vld [vmem:[%s0 + $0x4] sm:$0xf]
  %v49 = vld [vmem:[%s0 + $0x8] sm:$0xf]
  %v50 = vld [vmem:[%s0 + $0xc] sm:$0xf]
  %v51 = vld [vmem:[%s0 + $0x10] sm:$0xf]
  %v52 = vld [vmem:[%s0 + $0x14] sm:$0xf]
  %v53 = vld [vmem:[%s0 + $0x18] sm:$0xf]
  %v54 = vld [vmem:[%s0 + $0x1c] sm:$0xf]
  %v55 = vld [vmem:[%s0 + $0x20] sm:$0xf]
  %v56 = vld [vmem:[%s0 + $0x24] sm:$0xf]
  %v57 = vld [vmem:[%s0 + $0x28] sm:$0xf]
  %v58 = vld [vmem:[%s0 + $0x2c] sm:$0xf]
  %v59 = vld [vmem:[%s0 + $0x30] sm:$0xf]
  %v60 = vld [vmem:[%s0 + $0x34] sm:$0xf]
  %v61 = vld [vmem:[%s0 + $0x38] sm:$0xf]
  %v62 = vld [vmem:[%s0 + $0x3c] sm:$0xf]
  %v79 = vunpack.c.l.b16 %v47
  %v80 = vunpack.c.l.b16 %v48
  %v81 = vunpack.c.l.b16 %v49
  %v82 = vunpack.c.l.b16 %v50
  %v83 = vunpack.c.l.b16 %v51
  %v84 = vunpack.c.l.b16 %v52
  %v85 = vunpack.c.l.b16 %v53
  %v86 = vunpack.c.l.b16 %v54
  %v87 = vunpack.c.l.b16 %v55
  %v88 = vunpack.c.l.b16 %v56
  %v89 = vunpack.c.l.b16 %v57
  %v90 = vunpack.c.l.b16 %v58
  %v91 = vunpack.c.l.b16 %v59
  %v92 = vunpack.c.l.b16 %v60
  %v93 = vunpack.c.l.b16 %v61
  %v94 = vunpack.c.l.b16 %v62
  %v95 = vpack.c.b16 %v80, %v79
  %v96 = vpack.c.b16 %v82, %v81
  %v97 = vpack.c.b16 %v84, %v83
  %v98 = vpack.c.b16 %v86, %v85
  %v99 = vpack.c.b16 %v88, %v87
  %v100 = vpack.c.b16 %v90, %v89
  %v101 = vpack.c.b16 %v92, %v91
  %v102 = vpack.c.b16 %v94, %v93
  %v103 = vrot.slane %v95, 7
  %v104 = vrot.slane %v96, 7
  %v105 = vrot.slane %v97, 7
  %v106 = vrot.slane %v98, 7
  %v107 = vrot.slane %v99, 7
  %v108 = vrot.slane %v100, 7
  %v109 = vrot.slane %v101, 7
  %v110 = vrot.slane %v102, 7
  %vm111 = vcmask 1040384
  %v114 = vsel %vm111, 0, %v103
  %v116 = vsel %vm111, 0, %v104
  %v118 = vsel %vm111, 0, %v105
  %v120 = vsel %vm111, 0, %v106
  %v122 = vsel %vm111, 0, %v107
  %v124 = vsel %vm111, 0, %v108
  %v126 = vsel %vm111, 0, %v109
  %v128 = vsel %vm111, 0, %v110
  %v130 = vshrl.u32 %v95, 16
  %v132 = vrot.slane %v130, 7
  %v133 = vshll.u32 %v95, 16
  %v135 = vor.u32 %v132, %v133
  %v137 = vshrl.u32 %v96, 16
  %v139 = vrot.slane %v137, 7
  %v140 = vshll.u32 %v96, 16
  %v142 = vor.u32 %v139, %v140
  %v144 = vshrl.u32 %v97, 16
  %v146 = vrot.slane %v144, 7
  %v147 = vshll.u32 %v97, 16
  %v149 = vor.u32 %v146, %v147
  %v151 = vshrl.u32 %v98, 16
  %v153 = vrot.slane %v151, 7
  %v154 = vshll.u32 %v98, 16
  %v156 = vor.u32 %v153, %v154
  %v158 = vshrl.u32 %v99, 16
  %v160 = vrot.slane %v158, 7
  %v161 = vshll.u32 %v99, 16
  %v163 = vor.u32 %v160, %v161
  %v165 = vshrl.u32 %v100, 16
  %v167 = vrot.slane %v165, 7
  %v168 = vshll.u32 %v100, 16
  %v170 = vor.u32 %v167, %v168
  %v172 = vshrl.u32 %v101, 16
  %v174 = vrot.slane %v172, 7
  %v175 = vshll.u32 %v101, 16
  %v177 = vor.u32 %v174, %v175
  %v179 = vshrl.u32 %v102, 16
  %v181 = vrot.slane %v179, 7
  %v182 = vshll.u32 %v102, 16
  %v184 = vor.u32 %v181, %v182
  %vm193 = vcmask 1040384
  %vm194 = vsmask.f32 256
  %vm195 = vmand %vm193, %vm194
  %v196 = vsel %vm195, 0, %v135
  %v197 = vsel %vm195, 0, %v142
  %v198 = vsel %vm195, 0, %v149
  %v199 = vsel %vm195, 0, %v156
  %v200 = vsel %vm195, 0, %v163
  %v201 = vsel %vm195, 0, %v170
  %v202 = vsel %vm195, 0, %v177
  %v203 = vsel %vm195, 0, %v184
  %212 = vrot.lane.b32.xlu0 %v196, 4
  %v213 = vpop.permute.xlu0 %212
  %214 = vrot.lane.b32.xlu0 %v197, 4
  %v215 = vpop.permute.xlu0 %214
  %216 = vrot.lane.b32.xlu0 %v198, 4
  %v217 = vpop.permute.xlu0 %216
  %218 = vrot.lane.b32.xlu0 %v199, 4
  %v219 = vpop.permute.xlu0 %218
  %220 = vrot.lane.b32.xlu0 %v200, 4
  %v221 = vpop.permute.xlu0 %220
  %222 = vrot.lane.b32.xlu0 %v201, 4
  %v223 = vpop.permute.xlu0 %222
  %224 = vrot.lane.b32.xlu0 %v202, 4
  %v225 = vpop.permute.xlu0 %224
  %226 = vrot.lane.b32.xlu0 %v203, 4
  %v227 = vpop.permute.xlu0 %226
  %228 = vrot.lane.b32.xlu0 %v95, 8
  %v229 = vpop.permute.xlu0 %228
  %230 = vrot.lane.b32.xlu0 %v96, 8
  %v231 = vpop.permute.xlu0 %230
  %232 = vrot.lane.b32.xlu0 %v97, 8
  %v233 = vpop.permute.xlu0 %232
  %234 = vrot.lane.b32.xlu0 %v98, 8
  %v235 = vpop.permute.xlu0 %234
  %236 = vrot.lane.b32.xlu0 %v99, 8
  %v237 = vpop.permute.xlu0 %236
  %238 = vrot.lane.b32.xlu0 %v100, 8
  %v239 = vpop.permute.xlu0 %238
  %240 = vrot.lane.b32.xlu0 %v101, 8
  %v241 = vpop.permute.xlu0 %240
  %242 = vrot.lane.b32.xlu0 %v102, 8
  %v243 = vpop.permute.xlu0 %242
  %vm244 = vcmask 31744
  %v246 = vsel %vm244, %v114, %v213
  %v248 = vsel %vm244, %v116, %v215
  %v250 = vsel %vm244, %v118, %v217
  %v252 = vsel %vm244, %v120, %v219
  %v254 = vsel %vm244, %v122, %v221
  %v256 = vsel %vm244, %v124, %v223
  %v258 = vsel %vm244, %v126, %v225
  %v260 = vsel %vm244, %v128, %v227
  %vm261 = vcmask 64512
  %v263 = vsel %vm261, %v246, %v229
  %v265 = vsel %vm261, %v248, %v231
  %v267 = vsel %vm261, %v250, %v233
  %v269 = vsel %vm261, %v252, %v235
  %v271 = vsel %vm261, %v254, %v237
  %v273 = vsel %vm261, %v256, %v239
  %v275 = vsel %vm261, %v258, %v241
  %v277 = vsel %vm261, %v260, %v243
  %v278 = vld [vmem:[%s1] sm:$0xf]
  %v279 = vld [vmem:[%s1 + $0x4] sm:$0x3]
  %v282 = vunpack.c.l.b16 %v278
  %v283 = vunpack.c.l.b16 %v279
  %v284 = vpack.c.b16 %v283, %v282
  %vm285 = vcmask 97280
  %v286 = vsel %vm285, %v263, 0
  %v288 = vsel %vm285, %v265, 0
  %v290 = vsel %vm285, %v267, 0
  %v292 = vsel %vm285, %v269, 0
  %v294 = vsel %vm285, %v271, 0
  %v296 = vsel %vm285, %v273, 0
  %v298 = vsel %vm285, %v275, 0
  %v300 = vsel %vm285, %v277, 0
  %vm302 = vcmask 1045504
  %v304 = vsel %vm302, %v284, 0
  %306 = vmatprep.subr.bf16.mxu0 0
  %307 = vmatpush1.bf16.msra.mxu0 0
  %308 = vmatprep.subr.bf16.mxu0 0
  %309 = vmatpush1.bf16.msra.mxu0 0
  %310 = vmatprep.subr.bf16.mxu0 0
  %311 = vmatpush1.bf16.msra.mxu0 0
  %312 = vmatprep.subr.bf16.mxu0 0
  %313 = vmatpush1.bf16.msra.mxu0 0
  %314 = vmatprep.subr.bf16.mxu0 0
  %315 = vmatpush1.bf16.msra.mxu0 0
  %316 = vmatprep.subr.bf16.mxu0 0
  %317 = vmatpush1.bf16.msra.mxu0 0
  %318 = vmatprep.subr.bf16.mxu0 0
  %319 = vmatpush1.bf16.msra.mxu0 0
  %320 = vmatprep.subr.bf16.mxu0 0
  %321 = vmatpush1.bf16.msra.mxu0 %v304
  %322 = vmatprep.subr.bf16.mxu0 0
  %323 = vmatpush2.bf16.msra.mxu0 0
  %324 = vmatprep.subr.bf16.mxu0 0
  %325 = vmatpush2.bf16.msra.mxu0 0
  %326 = vmatprep.subr.bf16.mxu0 0
  %327 = vmatpush2.bf16.msra.mxu0 0
  %328 = vmatprep.subr.bf16.mxu0 0
  %329 = vmatpush2.bf16.msra.mxu0 0
  %330 = vmatprep.subr.bf16.mxu0 0
  %331 = vmatpush2.bf16.msra.mxu0 0
  %332 = vmatprep.subr.bf16.mxu0 0
  %333 = vmatpush2.bf16.msra.mxu0 0
  %334 = vmatprep.subr.bf16.mxu0 0
  %335 = vmatpush2.bf16.msra.mxu0 0
  %336 = vmatprep.subr.bf16.mxu0 0
  %337 = vmatpush2.bf16.msra.mxu0 0
  %338 = vmatprep.mubr.bf16.mxu0 0
  %339 = vmatmul.mubr.bf16.gmra.mxu0 %v286
  %v340 = vpop.f32.mrf.mxu0
  %v341 = vadd.f32 0.0, %v340
  %v342 = vpop.f32.mrf.mxu0
  %v343 = vpop.f32.mrf.mxu0
  %v344 = vadd.f32 0.0, %v343
  %v345 = vpop.f32.mrf.mxu0
  %346 = vmatprep.mubr.bf16.mxu0 0
  %347 = vmatmul.mubr.bf16.gmra.mxu0 %v288
  %v348 = vpop.f32.mrf.mxu0
  %v349 = vadd.f32 0.0, %v348
  %v350 = vpop.f32.mrf.mxu0
  %v351 = vpop.f32.mrf.mxu0
  %v352 = vadd.f32 0.0, %v351
  %v353 = vpop.f32.mrf.mxu0
  %354 = vmatprep.mubr.bf16.mxu0 0
  %355 = vmatmul.mubr.bf16.gmra.mxu0 %v290
  %v356 = vpop.f32.mrf.mxu0
  %v357 = vadd.f32 0.0, %v356
  %v358 = vpop.f32.mrf.mxu0
  %v359 = vpop.f32.mrf.mxu0
  %v360 = vadd.f32 0.0, %v359
  %v361 = vpop.f32.mrf.mxu0
  %362 = vmatprep.mubr.bf16.mxu0 0
  %363 = vmatmul.mubr.bf16.gmra.mxu0 %v292
  %v364 = vpop.f32.mrf.mxu0
  %v365 = vadd.f32 0.0, %v364
  %v366 = vpop.f32.mrf.mxu0
  %v367 = vpop.f32.mrf.mxu0
  %v368 = vadd.f32 0.0, %v367
  %v369 = vpop.f32.mrf.mxu0
  %370 = vmatprep.mubr.bf16.mxu0 0
  %371 = vmatmul.mubr.bf16.gmra.mxu0 %v294
  %v372 = vpop.f32.mrf.mxu0
  %v373 = vadd.f32 0.0, %v372
  %v374 = vpop.f32.mrf.mxu0
  %v375 = vpop.f32.mrf.mxu0
  %v376 = vadd.f32 0.0, %v375
  %v377 = vpop.f32.mrf.mxu0
  %378 = vmatprep.mubr.bf16.mxu0 0
  %379 = vmatmul.mubr.bf16.gmra.mxu0 %v296
  %v380 = vpop.f32.mrf.mxu0
  %v381 = vadd.f32 0.0, %v380
  %v382 = vpop.f32.mrf.mxu0
  %v383 = vpop.f32.mrf.mxu0
  %v384 = vadd.f32 0.0, %v383
  %v385 = vpop.f32.mrf.mxu0
  %386 = vmatprep.mubr.bf16.mxu0 0
  %387 = vmatmul.mubr.bf16.gmra.mxu0 %v298
  %v388 = vpop.f32.mrf.mxu0
  %v389 = vadd.f32 0.0, %v388
  %v390 = vpop.f32.mrf.mxu0
  %v391 = vpop.f32.mrf.mxu0
  %v392 = vadd.f32 0.0, %v391
  %v393 = vpop.f32.mrf.mxu0
  %394 = vmatprep.mubr.bf16.mxu0 0
  %395 = vmatmul.mubr.bf16.gmra.mxu0 %v300
  %v396 = vpop.f32.mrf.mxu0
  %v397 = vadd.f32 0.0, %v396
  %v398 = vpop.f32.mrf.mxu0
  %v399 = vpop.f32.mrf.mxu0
  %v400 = vadd.f32 0.0, %v399
  %v401 = vpop.f32.mrf.mxu0
  %402 = vdwg.mxu0
  %v403 = vld [vmem:[%s2] sm:$0x1]
  %v405 = vlaneseq
  %v406 = vshrl.u32 %v405, 7
  %v407 = vsub.s32 0, %v406
  %v408 = vrot.slane %v403, %v407
  %409 = vrot.lane.b32.xlu0 %v408, 32
  %v410 = vpop.permute.xlu0 %409
  %v412 = vadd.f32 %v341, %v410
  %v413 = vadd.f32 %v344, %v410
  %v414 = vadd.f32 %v349, %v410
  %v415 = vadd.f32 %v352, %v410
  %v416 = vadd.f32 %v357, %v410
  %v417 = vadd.f32 %v360, %v410
  %v418 = vadd.f32 %v365, %v410
  %v419 = vadd.f32 %v368, %v410
  %v420 = vadd.f32 %v373, %v410
  %v421 = vadd.f32 %v376, %v410
  %v422 = vadd.f32 %v381, %v410
  %v423 = vadd.f32 %v384, %v410
  %v424 = vadd.f32 %v389, %v410
  %v425 = vadd.f32 %v392, %v410
  %v426 = vadd.f32 %v397, %v410
  %v427 = vadd.f32 %v400, %v410
  %v428 = vld [vmem:[%s4] sm:$0x1]
  %v429 = vlaneseq
  %v430 = vshrl.u32 %v429, 7
  %v431 = vsub.s32 0, %v430
  %v432 = vrot.slane %v428, %v431
  %v433 = vadd.f32 %v341, %v432
  %v434 = vadd.f32 %v344, %v432
  %v435 = vadd.f32 %v349, %v432
  %v436 = vadd.f32 %v352, %v432
  %v437 = vadd.f32 %v357, %v432
  %v438 = vadd.f32 %v360, %v432
  %v439 = vadd.f32 %v365, %v432
  %v440 = vadd.f32 %v368, %v432
  %v441 = vadd.f32 %v373, %v432
  %v442 = vadd.f32 %v376, %v432
  %v443 = vadd.f32 %v381, %v432
  %v444 = vadd.f32 %v384, %v432
  %v445 = vadd.f32 %v389, %v432
  %v446 = vadd.f32 %v392, %v432
  %v447 = vadd.f32 %v397, %v432
  %v448 = vadd.f32 %v400, %v432
  %vm449 = vcmask 261120
  %v450 = vsel %vm449, %v433, 0.0
  %451 = vadd.xlane.f32.xlu0 %v450
  %v452 = vpop.xlane.xlu0 %451
  %v453 = vsel %vm449, %v434, 0.0
  %454 = vadd.xlane.f32.xlu0 %v453
  %v455 = vpop.xlane.xlu0 %454
  %v456 = vsel %vm449, %v435, 0.0
  %457 = vadd.xlane.f32.xlu0 %v456
  %v458 = vpop.xlane.xlu0 %457
  %v459 = vsel %vm449, %v436, 0.0
  %460 = vadd.xlane.f32.xlu0 %v459
  %v461 = vpop.xlane.xlu0 %460
  %v462 = vsel %vm449, %v437, 0.0
  %463 = vadd.xlane.f32.xlu0 %v462
  %v464 = vpop.xlane.xlu0 %463
  %v465 = vsel %vm449, %v438, 0.0
  %466 = vadd.xlane.f32.xlu0 %v465
  %v467 = vpop.xlane.xlu0 %466
  %v468 = vsel %vm449, %v439, 0.0
  %469 = vadd.xlane.f32.xlu0 %v468
  %v470 = vpop.xlane.xlu0 %469
  %v471 = vsel %vm449, %v440, 0.0
  %472 = vadd.xlane.f32.xlu0 %v471
  %v473 = vpop.xlane.xlu0 %472
  %v474 = vsel %vm449, %v441, 0.0
  %475 = vadd.xlane.f32.xlu0 %v474
  %v476 = vpop.xlane.xlu0 %475
  %v477 = vsel %vm449, %v442, 0.0
  %478 = vadd.xlane.f32.xlu0 %v477
  %v479 = vpop.xlane.xlu0 %478
  %v480 = vsel %vm449, %v443, 0.0
  %481 = vadd.xlane.f32.xlu0 %v480
  %v482 = vpop.xlane.xlu0 %481
  %v483 = vsel %vm449, %v444, 0.0
  %484 = vadd.xlane.f32.xlu0 %v483
  %v485 = vpop.xlane.xlu0 %484
  %v486 = vsel %vm449, %v445, 0.0
  %487 = vadd.xlane.f32.xlu0 %v486
  %v488 = vpop.xlane.xlu0 %487
  %v489 = vsel %vm449, %v446, 0.0
  %490 = vadd.xlane.f32.xlu0 %v489
  %v491 = vpop.xlane.xlu0 %490
  %v492 = vsel %vm449, %v447, 0.0
  %493 = vadd.xlane.f32.xlu0 %v492
  %v494 = vpop.xlane.xlu0 %493
  %v495 = vsel %vm449, %v448, 0.0
  %496 = vadd.xlane.f32.xlu0 %v495
  %v497 = vpop.xlane.xlu0 %496
  %v498 = vrcp.pop 32.0
  %v499 = vmul.f32 %v452, %v498
  %v500 = vmul.f32 %v455, %v498
  %v501 = vmul.f32 %v458, %v498
  %v502 = vmul.f32 %v461, %v498
  %v503 = vmul.f32 %v464, %v498
  %v504 = vmul.f32 %v467, %v498
  %v505 = vmul.f32 %v470, %v498
  %v506 = vmul.f32 %v473, %v498
  %v507 = vmul.f32 %v476, %v498
  %v508 = vmul.f32 %v479, %v498
  %v509 = vmul.f32 %v482, %v498
  %v510 = vmul.f32 %v485, %v498
  %v511 = vmul.f32 %v488, %v498
  %v512 = vmul.f32 %v491, %v498
  %v513 = vmul.f32 %v494, %v498
  %v514 = vmul.f32 %v497, %v498
  %v515 = vsub.f32 %v433, %v499
  %v516 = vsub.f32 %v434, %v500
  %v517 = vsub.f32 %v435, %v501
  %v518 = vsub.f32 %v436, %v502
  %v519 = vsub.f32 %v437, %v503
  %v520 = vsub.f32 %v438, %v504
  %v521 = vsub.f32 %v439, %v505
  %v522 = vsub.f32 %v440, %v506
  %v523 = vsub.f32 %v441, %v507
  %v524 = vsub.f32 %v442, %v508
  %v525 = vsub.f32 %v443, %v509
  %v526 = vsub.f32 %v444, %v510
  %v527 = vsub.f32 %v445, %v511
  %v528 = vsub.f32 %v446, %v512
  %v529 = vsub.f32 %v447, %v513
  %v530 = vsub.f32 %v448, %v514
  %v531 = vmul.f32 %v515, %v515
  %v532 = vmul.f32 %v516, %v516
  %v533 = vmul.f32 %v517, %v517
  %v534 = vmul.f32 %v518, %v518
  %v535 = vmul.f32 %v519, %v519
  %v536 = vmul.f32 %v520, %v520
  %v537 = vmul.f32 %v521, %v521
  %v538 = vmul.f32 %v522, %v522
  %v539 = vmul.f32 %v523, %v523
  %v540 = vmul.f32 %v524, %v524
  %v541 = vmul.f32 %v525, %v525
  %v542 = vmul.f32 %v526, %v526
  %v543 = vmul.f32 %v527, %v527
  %v544 = vmul.f32 %v528, %v528
  %v545 = vmul.f32 %v529, %v529
  %v546 = vmul.f32 %v530, %v530
  %v547 = vsel %vm449, %v531, 0.0
  %548 = vadd.xlane.f32.xlu0 %v547
  %v549 = vpop.xlane.xlu0 %548
  %v550 = vsel %vm449, %v532, 0.0
  %551 = vadd.xlane.f32.xlu0 %v550
  %v552 = vpop.xlane.xlu0 %551
  %v553 = vsel %vm449, %v533, 0.0
  %554 = vadd.xlane.f32.xlu0 %v553
  %v555 = vpop.xlane.xlu0 %554
  %v556 = vsel %vm449, %v534, 0.0
  %557 = vadd.xlane.f32.xlu0 %v556
  %v558 = vpop.xlane.xlu0 %557
  %v559 = vsel %vm449, %v535, 0.0
  %560 = vadd.xlane.f32.xlu0 %v559
  %v561 = vpop.xlane.xlu0 %560
  %v562 = vsel %vm449, %v536, 0.0
  %563 = vadd.xlane.f32.xlu0 %v562
  %v564 = vpop.xlane.xlu0 %563
  %v565 = vsel %vm449, %v537, 0.0
  %566 = vadd.xlane.f32.xlu0 %v565
  %v567 = vpop.xlane.xlu0 %566
  %v568 = vsel %vm449, %v538, 0.0
  %569 = vadd.xlane.f32.xlu0 %v568
  %v570 = vpop.xlane.xlu0 %569
  %v571 = vsel %vm449, %v539, 0.0
  %572 = vadd.xlane.f32.xlu0 %v571
  %v573 = vpop.xlane.xlu0 %572
  %v574 = vsel %vm449, %v540, 0.0
  %575 = vadd.xlane.f32.xlu0 %v574
  %v576 = vpop.xlane.xlu0 %575
  %v577 = vsel %vm449, %v541, 0.0
  %578 = vadd.xlane.f32.xlu0 %v577
  %v579 = vpop.xlane.xlu0 %578
  %v580 = vsel %vm449, %v542, 0.0
  %581 = vadd.xlane.f32.xlu0 %v580
  %v582 = vpop.xlane.xlu0 %581
  %v583 = vsel %vm449, %v543, 0.0
  %584 = vadd.xlane.f32.xlu0 %v583
  %v585 = vpop.xlane.xlu0 %584
  %v586 = vsel %vm449, %v544, 0.0
  %587 = vadd.xlane.f32.xlu0 %v586
  %v588 = vpop.xlane.xlu0 %587
  %v589 = vsel %vm449, %v545, 0.0
  %590 = vadd.xlane.f32.xlu0 %v589
  %v591 = vpop.xlane.xlu0 %590
  %v592 = vsel %vm449, %v546, 0.0
  %593 = vadd.xlane.f32.xlu0 %v592
  %v594 = vpop.xlane.xlu0 %593
  %v595 = vmul.f32 %v549, %v498
  %v596 = vmul.f32 %v552, %v498
  %v597 = vmul.f32 %v555, %v498
  %v598 = vmul.f32 %v558, %v498
  %v599 = vmul.f32 %v561, %v498
  %v600 = vmul.f32 %v564, %v498
  %v601 = vmul.f32 %v567, %v498
  %v602 = vmul.f32 %v570, %v498
  %v603 = vmul.f32 %v573, %v498
  %v604 = vmul.f32 %v576, %v498
  %v605 = vmul.f32 %v579, %v498
  %v606 = vmul.f32 %v582, %v498
  %v607 = vmul.f32 %v585, %v498
  %v608 = vmul.f32 %v588, %v498
  %v609 = vmul.f32 %v591, %v498
  %v610 = vmul.f32 %v594, %v498
  %v611 = vadd.f32 %v595, 1e-05
  %v612 = vadd.f32 %v596, 1e-05
  %v613 = vadd.f32 %v597, 1e-05
  %v614 = vadd.f32 %v598, 1e-05
  %v615 = vadd.f32 %v599, 1e-05
  %v616 = vadd.f32 %v600, 1e-05
  %v617 = vadd.f32 %v601, 1e-05
  %v618 = vadd.f32 %v602, 1e-05
  %v619 = vadd.f32 %v603, 1e-05
  %v620 = vadd.f32 %v604, 1e-05
  %v621 = vadd.f32 %v605, 1e-05
  %v622 = vadd.f32 %v606, 1e-05
  %v623 = vadd.f32 %v607, 1e-05
  %v624 = vadd.f32 %v608, 1e-05
  %v625 = vadd.f32 %v609, 1e-05
  %v626 = vadd.f32 %v610, 1e-05
  %v627 = vrsqrt.pop %v611
  %v628 = vrsqrt.pop %v612
  %v629 = vrsqrt.pop %v613
  %v630 = vrsqrt.pop %v614
  %v631 = vrsqrt.pop %v615
  %v632 = vrsqrt.pop %v616
  %v633 = vrsqrt.pop %v617
  %v634 = vrsqrt.pop %v618
  %v635 = vrsqrt.pop %v619
  %v636 = vrsqrt.pop %v620
  %v637 = vrsqrt.pop %v621
  %v638 = vrsqrt.pop %v622
  %v639 = vrsqrt.pop %v623
  %v640 = vrsqrt.pop %v624
  %v641 = vrsqrt.pop %v625
  %v642 = vrsqrt.pop %v626
  %v643 = vmul.f32 %v515, %v627
  %v644 = vmul.f32 %v516, %v628
  %v645 = vmul.f32 %v517, %v629
  %v646 = vmul.f32 %v518, %v630
  %v647 = vmul.f32 %v519, %v631
  %v648 = vmul.f32 %v520, %v632
  %v649 = vmul.f32 %v521, %v633
  %v650 = vmul.f32 %v522, %v634
  %v651 = vmul.f32 %v523, %v635
  %v652 = vmul.f32 %v524, %v636
  %v653 = vmul.f32 %v525, %v637
  %v654 = vmul.f32 %v526, %v638
  %v655 = vmul.f32 %v527, %v639
  %v656 = vmul.f32 %v528, %v640
  %v657 = vmul.f32 %v529, %v641
  %v658 = vmul.f32 %v530, %v642
  %v659 = vld [vmem:[%s5] sm:$0x1]
  %v660 = vlaneseq
  %v661 = vshrl.u32 %v660, 7
  %v662 = vsub.s32 0, %v661
  %v663 = vrot.slane %v659, %v662
  %v664 = vmul.f32 %v643, %v663
  %v665 = vmul.f32 %v644, %v663
  %v666 = vmul.f32 %v645, %v663
  %v667 = vmul.f32 %v646, %v663
  %v668 = vmul.f32 %v647, %v663
  %v669 = vmul.f32 %v648, %v663
  %v670 = vmul.f32 %v649, %v663
  %v671 = vmul.f32 %v650, %v663
  %v672 = vmul.f32 %v651, %v663
  %v673 = vmul.f32 %v652, %v663
  %v674 = vmul.f32 %v653, %v663
  %v675 = vmul.f32 %v654, %v663
  %v676 = vmul.f32 %v655, %v663
  %v677 = vmul.f32 %v656, %v663
  %v678 = vmul.f32 %v657, %v663
  %v679 = vmul.f32 %v658, %v663
  %v680 = vld [vmem:[%s6] sm:$0x1]
  %v681 = vlaneseq
  %v682 = vshrl.u32 %v681, 7
  %v683 = vsub.s32 0, %v682
  %v684 = vrot.slane %v680, %v683
  %v685 = vadd.f32 %v664, %v684
  %v686 = vadd.f32 %v665, %v684
  %v687 = vadd.f32 %v666, %v684
  %v688 = vadd.f32 %v667, %v684
  %v689 = vadd.f32 %v668, %v684
  %v690 = vadd.f32 %v669, %v684
  %v691 = vadd.f32 %v670, %v684
  %v692 = vadd.f32 %v671, %v684
  %v693 = vadd.f32 %v672, %v684
  %v694 = vadd.f32 %v673, %v684
  %v695 = vadd.f32 %v674, %v684
  %v696 = vadd.f32 %v675, %v684
  %v697 = vadd.f32 %v676, %v684
  %v698 = vadd.f32 %v677, %v684
  %v699 = vadd.f32 %v678, %v684
  %v700 = vadd.f32 %v679, %v684
  %717 = vrot.lane.b32.xlu0 %v412, 96
  %v718 = vpop.permute.xlu0 %717
  %719 = vrot.lane.b32.xlu0 %v413, 96
  %v720 = vpop.permute.xlu0 %719
  %721 = vrot.lane.b32.xlu0 %v414, 96
  %v722 = vpop.permute.xlu0 %721
  %723 = vrot.lane.b32.xlu0 %v415, 96
  %v724 = vpop.permute.xlu0 %723
  %725 = vrot.lane.b32.xlu0 %v416, 96
  %v726 = vpop.permute.xlu0 %725
  %727 = vrot.lane.b32.xlu0 %v417, 96
  %v728 = vpop.permute.xlu0 %727
  %729 = vrot.lane.b32.xlu0 %v418, 96
  %v730 = vpop.permute.xlu0 %729
  %731 = vrot.lane.b32.xlu0 %v419, 96
  %v732 = vpop.permute.xlu0 %731
  %733 = vrot.lane.b32.xlu0 %v420, 96
  %v734 = vpop.permute.xlu0 %733
  %735 = vrot.lane.b32.xlu0 %v421, 96
  %v736 = vpop.permute.xlu0 %735
  %737 = vrot.lane.b32.xlu0 %v422, 96
  %v738 = vpop.permute.xlu0 %737
  %739 = vrot.lane.b32.xlu0 %v423, 96
  %v740 = vpop.permute.xlu0 %739
  %741 = vrot.lane.b32.xlu0 %v424, 96
  %v742 = vpop.permute.xlu0 %741
  %743 = vrot.lane.b32.xlu0 %v425, 96
  %v744 = vpop.permute.xlu0 %743
  %745 = vrot.lane.b32.xlu0 %v426, 96
  %v746 = vpop.permute.xlu0 %745
  %747 = vrot.lane.b32.xlu0 %v427, 96
  %v748 = vpop.permute.xlu0 %747
  %v765 = vadd.f32 %v685, %v718
  %v766 = vadd.f32 %v686, %v720
  %v767 = vadd.f32 %v687, %v722
  %v768 = vadd.f32 %v688, %v724
  %v769 = vadd.f32 %v689, %v726
  %v770 = vadd.f32 %v690, %v728
  %v771 = vadd.f32 %v691, %v730
  %v772 = vadd.f32 %v692, %v732
  %v773 = vadd.f32 %v693, %v734
  %v774 = vadd.f32 %v694, %v736
  %v775 = vadd.f32 %v695, %v738
  %v776 = vadd.f32 %v696, %v740
  %v777 = vadd.f32 %v697, %v742
  %v778 = vadd.f32 %v698, %v744
  %v779 = vadd.f32 %v699, %v746
  %v780 = vadd.f32 %v700, %v748
  %v781 = vmax.f32 %v765, 0.0
  %v782 = vmax.f32 %v766, 0.0
  %v783 = vmax.f32 %v767, 0.0
  %v784 = vmax.f32 %v768, 0.0
  %v785 = vmax.f32 %v769, 0.0
  %v786 = vmax.f32 %v770, 0.0
  %v787 = vmax.f32 %v771, 0.0
  %v788 = vmax.f32 %v772, 0.0
  %v789 = vmax.f32 %v773, 0.0
  %v790 = vmax.f32 %v774, 0.0
  %v791 = vmax.f32 %v775, 0.0
  %v792 = vmax.f32 %v776, 0.0
  %v793 = vmax.f32 %v777, 0.0
  %v794 = vmax.f32 %v778, 0.0
  %v795 = vmax.f32 %v779, 0.0
  %v796 = vmax.f32 %v780, 0.0
  %v797 = vpack.c.bf16 %v782, %v781
  %v798 = vpack.c.bf16 %v784, %v783
  %v799 = vpack.c.bf16 %v786, %v785
  %v800 = vpack.c.bf16 %v788, %v787
  %v801 = vpack.c.bf16 %v790, %v789
  %v802 = vpack.c.bf16 %v792, %v791
  %v803 = vpack.c.bf16 %v794, %v793
  %v804 = vpack.c.bf16 %v796, %v795
  %v813 = vrot.slane %v797, 6
  %v814 = vrot.slane %v798, 6
  %v815 = vrot.slane %v799, 6
  %v816 = vrot.slane %v800, 6
  %v817 = vrot.slane %v801, 6
  %v818 = vrot.slane %v802, 6
  %v819 = vrot.slane %v803, 6
  %v820 = vrot.slane %v804, 6
  %vm821 = vcmask 1041408
  %v823 = vsel %vm821, 0, %v813
  %v825 = vsel %vm821, 0, %v814
  %v827 = vsel %vm821, 0, %v815
  %v829 = vsel %vm821, 0, %v816
  %v831 = vsel %vm821, 0, %v817
  %v833 = vsel %vm821, 0, %v818
  %v835 = vsel %vm821, 0, %v819
  %v837 = vsel %vm821, 0, %v820
  %v838 = vrot.slane %v797, 7
  %v839 = vrot.slane %v798, 7
  %v840 = vrot.slane %v799, 7
  %v841 = vrot.slane %v800, 7
  %v842 = vrot.slane %v801, 7
  %v843 = vrot.slane %v802, 7
  %v844 = vrot.slane %v803, 7
  %v845 = vrot.slane %v804, 7
  %v847 = vsel %vm111, 0, %v838
  %v849 = vsel %vm111, 0, %v839
  %v851 = vsel %vm111, 0, %v840
  %v853 = vsel %vm111, 0, %v841
  %v855 = vsel %vm111, 0, %v842
  %v857 = vsel %vm111, 0, %v843
  %v859 = vsel %vm111, 0, %v844
  %v861 = vsel %vm111, 0, %v845
  %870 = vrot.lane.b32.xlu0 %v847, 32
  %v871 = vpop.permute.xlu0 %870
  %872 = vrot.lane.b32.xlu0 %v849, 32
  %v873 = vpop.permute.xlu0 %872
  %874 = vrot.lane.b32.xlu0 %v851, 32
  %v875 = vpop.permute.xlu0 %874
  %876 = vrot.lane.b32.xlu0 %v853, 32
  %v877 = vpop.permute.xlu0 %876
  %878 = vrot.lane.b32.xlu0 %v855, 32
  %v879 = vpop.permute.xlu0 %878
  %880 = vrot.lane.b32.xlu0 %v857, 32
  %v881 = vpop.permute.xlu0 %880
  %882 = vrot.lane.b32.xlu0 %v859, 32
  %v883 = vpop.permute.xlu0 %882
  %884 = vrot.lane.b32.xlu0 %v861, 32
  %v885 = vpop.permute.xlu0 %884
  %886 = vrot.lane.b32.xlu0 %v797, 64
  %v887 = vpop.permute.xlu0 %886
  %888 = vrot.lane.b32.xlu0 %v798, 64
  %v889 = vpop.permute.xlu0 %888
  %890 = vrot.lane.b32.xlu0 %v799, 64
  %v891 = vpop.permute.xlu0 %890
  %892 = vrot.lane.b32.xlu0 %v800, 64
  %v893 = vpop.permute.xlu0 %892
  %894 = vrot.lane.b32.xlu0 %v801, 64
  %v895 = vpop.permute.xlu0 %894
  %896 = vrot.lane.b32.xlu0 %v802, 64
  %v897 = vpop.permute.xlu0 %896
  %898 = vrot.lane.b32.xlu0 %v803, 64
  %v899 = vpop.permute.xlu0 %898
  %900 = vrot.lane.b32.xlu0 %v804, 64
  %v901 = vpop.permute.xlu0 %900
  %v903 = vsel %vm449, %v823, %v871
  %v905 = vsel %vm449, %v825, %v873
  %v907 = vsel %vm449, %v827, %v875
  %v909 = vsel %vm449, %v829, %v877
  %v911 = vsel %vm449, %v831, %v879
  %v913 = vsel %vm449, %v833, %v881
  %v915 = vsel %vm449, %v835, %v883
  %v917 = vsel %vm449, %v837, %v885
  %vm918 = vcmask 523264
  %v920 = vsel %vm918, %v903, %v887
  %v922 = vsel %vm918, %v905, %v889
  %v924 = vsel %vm918, %v907, %v891
  %v926 = vsel %vm918, %v909, %v893
  %v928 = vsel %vm918, %v911, %v895
  %v930 = vsel %vm918, %v913, %v897
  %v932 = vsel %vm918, %v915, %v899
  %v934 = vsel %vm918, %v917, %v901
  %v935 = vld [vmem:[%s3] sm:$0xf]
  %v936 = vld [vmem:[%s3 + $0x4] sm:$0xf]
  %v937 = vld [vmem:[%s3 + $0x8] sm:$0xf]
  %v938 = vld [vmem:[%s3 + $0xc] sm:$0xf]
  %v939 = vld [vmem:[%s3 + $0x10] sm:$0xf]
  %v940 = vld [vmem:[%s3 + $0x14] sm:$0xf]
  %v941 = vld [vmem:[%s3 + $0x18] sm:$0xf]
  %v942 = vld [vmem:[%s3 + $0x1c] sm:$0xf]
  %v943 = vld [vmem:[%s3 + $0x20] sm:$0xf]
  %v944 = vld [vmem:[%s3 + $0x24] sm:$0xf]
  %v945 = vld [vmem:[%s3 + $0x28] sm:$0xf]
  %v946 = vld [vmem:[%s3 + $0x2c] sm:$0xf]
  %v947 = vld [vmem:[%s4 + $0x1] sm:$0x1]
  %v948 = vlaneseq
  %v949 = vshrl.u32 %v948, 7
  %v950 = vsub.s32 0, %v949
  %v951 = vrot.slane %v947, %v950
  %v964 = vunpack.c.l.b16 %v935
  %v965 = vunpack.c.l.b16 %v936
  %v966 = vunpack.c.l.b16 %v937
  %v967 = vunpack.c.l.b16 %v938
  %v968 = vunpack.c.l.b16 %v939
  %v969 = vunpack.c.l.b16 %v940
  %v970 = vunpack.c.l.b16 %v941
  %v971 = vunpack.c.l.b16 %v942
  %v972 = vunpack.c.l.b16 %v943
  %v973 = vunpack.c.l.b16 %v944
  %v974 = vunpack.c.l.b16 %v945
  %v975 = vunpack.c.l.b16 %v946
  %v976 = vpack.c.b16 %v965, %v964
  %v977 = vpack.c.b16 %v967, %v966
  %v978 = vpack.c.b16 %v969, %v968
  %v979 = vpack.c.b16 %v971, %v970
  %v980 = vpack.c.b16 %v973, %v972
  %v981 = vpack.c.b16 %v975, %v974
  %vm988 = vcmask 785408
  %v989 = vsel %vm988, %v920, 0
  %v991 = vsel %vm988, %v922, 0
  %v993 = vsel %vm988, %v924, 0
  %v995 = vsel %vm988, %v926, 0
  %v997 = vsel %vm988, %v928, 0
  %v999 = vsel %vm988, %v930, 0
  %v1001 = vsel %vm988, %v932, 0
  %v1003 = vsel %vm988, %v934, 0
  %1005 = vmatprep.subr.bf16.mxu0 0
  %1006 = vmatpush1.bf16.msra.mxu0 0
  %1007 = vmatprep.subr.bf16.mxu0 0
  %1008 = vmatpush1.bf16.msra.mxu0 0
  %1009 = vmatprep.subr.bf16.mxu0 0
  %1010 = vmatpush1.bf16.msra.mxu0 %v981
  %1011 = vmatprep.subr.bf16.mxu0 0
  %1012 = vmatpush1.bf16.msra.mxu0 %v980
  %1013 = vmatprep.subr.bf16.mxu0 0
  %1014 = vmatpush1.bf16.msra.mxu0 %v979
  %1015 = vmatprep.subr.bf16.mxu0 0
  %1016 = vmatpush1.bf16.msra.mxu0 %v978
  %1017 = vmatprep.subr.bf16.mxu0 0
  %1018 = vmatpush1.bf16.msra.mxu0 %v977
  %1019 = vmatprep.subr.bf16.mxu0 0
  %1020 = vmatpush1.bf16.msra.mxu0 %v976
  %1021 = vmatprep.subr.bf16.mxu0 0
  %1022 = vmatpush2.bf16.msra.mxu0 0
  %1023 = vmatprep.subr.bf16.mxu0 0
  %1024 = vmatpush2.bf16.msra.mxu0 0
  %1025 = vmatprep.subr.bf16.mxu0 0
  %1026 = vmatpush2.bf16.msra.mxu0 0
  %1027 = vmatprep.subr.bf16.mxu0 0
  %1028 = vmatpush2.bf16.msra.mxu0 0
  %1029 = vmatprep.subr.bf16.mxu0 0
  %1030 = vmatpush2.bf16.msra.mxu0 0
  %1031 = vmatprep.subr.bf16.mxu0 0
  %1032 = vmatpush2.bf16.msra.mxu0 0
  %1033 = vmatprep.subr.bf16.mxu0 0
  %1034 = vmatpush2.bf16.msra.mxu0 0
  %1035 = vmatprep.subr.bf16.mxu0 0
  %1036 = vmatpush2.bf16.msra.mxu0 0
  %1037 = vmatprep.mubr.bf16.mxu0 0
  %1038 = vmatmul.mubr.bf16.gmra.mxu0 %v989
  %v1039 = vpop.f32.mrf.mxu0
  %v1040 = vadd.f32 %v951, %v1039
  %v1041 = vpop.f32.mrf.mxu0
  %v1042 = vpop.f32.mrf.mxu0
  %v1043 = vadd.f32 %v951, %v1042
  %v1044 = vpop.f32.mrf.mxu0
  %1045 = vmatprep.mubr.bf16.mxu0 0
  %1046 = vmatmul.mubr.bf16.gmra.mxu0 %v991
  %v1047 = vpop.f32.mrf.mxu0
  %v1048 = vadd.f32 %v951, %v1047
  %v1049 = vpop.f32.mrf.mxu0
  %v1050 = vpop.f32.mrf.mxu0
  %v1051 = vadd.f32 %v951, %v1050
  %v1052 = vpop.f32.mrf.mxu0
  %1053 = vmatprep.mubr.bf16.mxu0 0
  %1054 = vmatmul.mubr.bf16.gmra.mxu0 %v993
  %v1055 = vpop.f32.mrf.mxu0
  %v1056 = vadd.f32 %v951, %v1055
  %v1057 = vpop.f32.mrf.mxu0
  %v1058 = vpop.f32.mrf.mxu0
  %v1059 = vadd.f32 %v951, %v1058
  %v1060 = vpop.f32.mrf.mxu0
  %1061 = vmatprep.mubr.bf16.mxu0 0
  %1062 = vmatmul.mubr.bf16.gmra.mxu0 %v995
  %v1063 = vpop.f32.mrf.mxu0
  %v1064 = vadd.f32 %v951, %v1063
  %v1065 = vpop.f32.mrf.mxu0
  %v1066 = vpop.f32.mrf.mxu0
  %v1067 = vadd.f32 %v951, %v1066
  %v1068 = vpop.f32.mrf.mxu0
  %1069 = vmatprep.mubr.bf16.mxu0 0
  %1070 = vmatmul.mubr.bf16.gmra.mxu0 %v997
  %v1071 = vpop.f32.mrf.mxu0
  %v1072 = vadd.f32 %v951, %v1071
  %v1073 = vpop.f32.mrf.mxu0
  %v1074 = vpop.f32.mrf.mxu0
  %v1075 = vadd.f32 %v951, %v1074
  %v1076 = vpop.f32.mrf.mxu0
  %1077 = vmatprep.mubr.bf16.mxu0 0
  %1078 = vmatmul.mubr.bf16.gmra.mxu0 %v999
  %v1079 = vpop.f32.mrf.mxu0
  %v1080 = vadd.f32 %v951, %v1079
  %v1081 = vpop.f32.mrf.mxu0
  %v1082 = vpop.f32.mrf.mxu0
  %v1083 = vadd.f32 %v951, %v1082
  %v1084 = vpop.f32.mrf.mxu0
  %1085 = vmatprep.mubr.bf16.mxu0 0
  %1086 = vmatmul.mubr.bf16.gmra.mxu0 %v1001
  %v1087 = vpop.f32.mrf.mxu0
  %v1088 = vadd.f32 %v951, %v1087
  %v1089 = vpop.f32.mrf.mxu0
  %v1090 = vpop.f32.mrf.mxu0
  %v1091 = vadd.f32 %v951, %v1090
  %v1092 = vpop.f32.mrf.mxu0
  %1093 = vmatprep.mubr.bf16.mxu0 0
  %1094 = vmatmul.mubr.bf16.gmra.mxu0 %v1003
  %v1095 = vpop.f32.mrf.mxu0
  %v1096 = vadd.f32 %v951, %v1095
  %v1097 = vpop.f32.mrf.mxu0
  %v1098 = vpop.f32.mrf.mxu0
  %v1099 = vadd.f32 %v951, %v1098
  %v1100 = vpop.f32.mrf.mxu0
  %1101 = vdwg.mxu0
  %v1102 = vsel %vm449, %v1040, 0.0
  %1103 = vadd.xlane.f32.xlu0 %v1102
  %v1104 = vpop.xlane.xlu0 %1103
  %v1105 = vsel %vm449, %v1043, 0.0
  %1106 = vadd.xlane.f32.xlu0 %v1105
  %v1107 = vpop.xlane.xlu0 %1106
  %v1108 = vsel %vm449, %v1048, 0.0
  %1109 = vadd.xlane.f32.xlu0 %v1108
  %v1110 = vpop.xlane.xlu0 %1109
  %v1111 = vsel %vm449, %v1051, 0.0
  %1112 = vadd.xlane.f32.xlu0 %v1111
  %v1113 = vpop.xlane.xlu0 %1112
  %v1114 = vsel %vm449, %v1056, 0.0
  %1115 = vadd.xlane.f32.xlu0 %v1114
  %v1116 = vpop.xlane.xlu0 %1115
  %v1117 = vsel %vm449, %v1059, 0.0
  %1118 = vadd.xlane.f32.xlu0 %v1117
  %v1119 = vpop.xlane.xlu0 %1118
  %v1120 = vsel %vm449, %v1064, 0.0
  %1121 = vadd.xlane.f32.xlu0 %v1120
  %v1122 = vpop.xlane.xlu0 %1121
  %v1123 = vsel %vm449, %v1067, 0.0
  %1124 = vadd.xlane.f32.xlu0 %v1123
  %v1125 = vpop.xlane.xlu0 %1124
  %v1126 = vsel %vm449, %v1072, 0.0
  %1127 = vadd.xlane.f32.xlu0 %v1126
  %v1128 = vpop.xlane.xlu0 %1127
  %v1129 = vsel %vm449, %v1075, 0.0
  %1130 = vadd.xlane.f32.xlu0 %v1129
  %v1131 = vpop.xlane.xlu0 %1130
  %v1132 = vsel %vm449, %v1080, 0.0
  %1133 = vadd.xlane.f32.xlu0 %v1132
  %v1134 = vpop.xlane.xlu0 %1133
  %v1135 = vsel %vm449, %v1083, 0.0
  %1136 = vadd.xlane.f32.xlu0 %v1135
  %v1137 = vpop.xlane.xlu0 %1136
  %v1138 = vsel %vm449, %v1088, 0.0
  %1139 = vadd.xlane.f32.xlu0 %v1138
  %v1140 = vpop.xlane.xlu0 %1139
  %v1141 = vsel %vm449, %v1091, 0.0
  %1142 = vadd.xlane.f32.xlu0 %v1141
  %v1143 = vpop.xlane.xlu0 %1142
  %v1144 = vsel %vm449, %v1096, 0.0
  %1145 = vadd.xlane.f32.xlu0 %v1144
  %v1146 = vpop.xlane.xlu0 %1145
  %v1147 = vsel %vm449, %v1099, 0.0
  %1148 = vadd.xlane.f32.xlu0 %v1147
  %v1149 = vpop.xlane.xlu0 %1148
  %v1150 = vmul.f32 %v1104, %v498
  %v1151 = vmul.f32 %v1107, %v498
  %v1152 = vmul.f32 %v1110, %v498
  %v1153 = vmul.f32 %v1113, %v498
  %v1154 = vmul.f32 %v1116, %v498
  %v1155 = vmul.f32 %v1119, %v498
  %v1156 = vmul.f32 %v1122, %v498
  %v1157 = vmul.f32 %v1125, %v498
  %v1158 = vmul.f32 %v1128, %v498
  %v1159 = vmul.f32 %v1131, %v498
  %v1160 = vmul.f32 %v1134, %v498
  %v1161 = vmul.f32 %v1137, %v498
  %v1162 = vmul.f32 %v1140, %v498
  %v1163 = vmul.f32 %v1143, %v498
  %v1164 = vmul.f32 %v1146, %v498
  %v1165 = vmul.f32 %v1149, %v498
  %v1166 = vsub.f32 %v1040, %v1150
  %v1167 = vsub.f32 %v1043, %v1151
  %v1168 = vsub.f32 %v1048, %v1152
  %v1169 = vsub.f32 %v1051, %v1153
  %v1170 = vsub.f32 %v1056, %v1154
  %v1171 = vsub.f32 %v1059, %v1155
  %v1172 = vsub.f32 %v1064, %v1156
  %v1173 = vsub.f32 %v1067, %v1157
  %v1174 = vsub.f32 %v1072, %v1158
  %v1175 = vsub.f32 %v1075, %v1159
  %v1176 = vsub.f32 %v1080, %v1160
  %v1177 = vsub.f32 %v1083, %v1161
  %v1178 = vsub.f32 %v1088, %v1162
  %v1179 = vsub.f32 %v1091, %v1163
  %v1180 = vsub.f32 %v1096, %v1164
  %v1181 = vsub.f32 %v1099, %v1165
  %v1182 = vmul.f32 %v1166, %v1166
  %v1183 = vmul.f32 %v1167, %v1167
  %v1184 = vmul.f32 %v1168, %v1168
  %v1185 = vmul.f32 %v1169, %v1169
  %v1186 = vmul.f32 %v1170, %v1170
  %v1187 = vmul.f32 %v1171, %v1171
  %v1188 = vmul.f32 %v1172, %v1172
  %v1189 = vmul.f32 %v1173, %v1173
  %v1190 = vmul.f32 %v1174, %v1174
  %v1191 = vmul.f32 %v1175, %v1175
  %v1192 = vmul.f32 %v1176, %v1176
  %v1193 = vmul.f32 %v1177, %v1177
  %v1194 = vmul.f32 %v1178, %v1178
  %v1195 = vmul.f32 %v1179, %v1179
  %v1196 = vmul.f32 %v1180, %v1180
  %v1197 = vmul.f32 %v1181, %v1181
  %v1198 = vsel %vm449, %v1182, 0.0
  %1199 = vadd.xlane.f32.xlu0 %v1198
  %v1200 = vpop.xlane.xlu0 %1199
  %v1201 = vsel %vm449, %v1183, 0.0
  %1202 = vadd.xlane.f32.xlu0 %v1201
  %v1203 = vpop.xlane.xlu0 %1202
  %v1204 = vsel %vm449, %v1184, 0.0
  %1205 = vadd.xlane.f32.xlu0 %v1204
  %v1206 = vpop.xlane.xlu0 %1205
  %v1207 = vsel %vm449, %v1185, 0.0
  %1208 = vadd.xlane.f32.xlu0 %v1207
  %v1209 = vpop.xlane.xlu0 %1208
  %v1210 = vsel %vm449, %v1186, 0.0
  %1211 = vadd.xlane.f32.xlu0 %v1210
  %v1212 = vpop.xlane.xlu0 %1211
  %v1213 = vsel %vm449, %v1187, 0.0
  %1214 = vadd.xlane.f32.xlu0 %v1213
  %v1215 = vpop.xlane.xlu0 %1214
  %v1216 = vsel %vm449, %v1188, 0.0
  %1217 = vadd.xlane.f32.xlu0 %v1216
  %v1218 = vpop.xlane.xlu0 %1217
  %v1219 = vsel %vm449, %v1189, 0.0
  %1220 = vadd.xlane.f32.xlu0 %v1219
  %v1221 = vpop.xlane.xlu0 %1220
  %v1222 = vsel %vm449, %v1190, 0.0
  %1223 = vadd.xlane.f32.xlu0 %v1222
  %v1224 = vpop.xlane.xlu0 %1223
  %v1225 = vsel %vm449, %v1191, 0.0
  %1226 = vadd.xlane.f32.xlu0 %v1225
  %v1227 = vpop.xlane.xlu0 %1226
  %v1228 = vsel %vm449, %v1192, 0.0
  %1229 = vadd.xlane.f32.xlu0 %v1228
  %v1230 = vpop.xlane.xlu0 %1229
  %v1231 = vsel %vm449, %v1193, 0.0
  %1232 = vadd.xlane.f32.xlu0 %v1231
  %v1233 = vpop.xlane.xlu0 %1232
  %v1234 = vsel %vm449, %v1194, 0.0
  %1235 = vadd.xlane.f32.xlu0 %v1234
  %v1236 = vpop.xlane.xlu0 %1235
  %v1237 = vsel %vm449, %v1195, 0.0
  %1238 = vadd.xlane.f32.xlu0 %v1237
  %v1239 = vpop.xlane.xlu0 %1238
  %v1240 = vsel %vm449, %v1196, 0.0
  %1241 = vadd.xlane.f32.xlu0 %v1240
  %v1242 = vpop.xlane.xlu0 %1241
  %v1243 = vsel %vm449, %v1197, 0.0
  %1244 = vadd.xlane.f32.xlu0 %v1243
  %v1245 = vpop.xlane.xlu0 %1244
  %v1246 = vmul.f32 %v1200, %v498
  %v1247 = vmul.f32 %v1203, %v498
  %v1248 = vmul.f32 %v1206, %v498
  %v1249 = vmul.f32 %v1209, %v498
  %v1250 = vmul.f32 %v1212, %v498
  %v1251 = vmul.f32 %v1215, %v498
  %v1252 = vmul.f32 %v1218, %v498
  %v1253 = vmul.f32 %v1221, %v498
  %v1254 = vmul.f32 %v1224, %v498
  %v1255 = vmul.f32 %v1227, %v498
  %v1256 = vmul.f32 %v1230, %v498
  %v1257 = vmul.f32 %v1233, %v498
  %v1258 = vmul.f32 %v1236, %v498
  %v1259 = vmul.f32 %v1239, %v498
  %v1260 = vmul.f32 %v1242, %v498
  %v1261 = vmul.f32 %v1245, %v498
  %v1262 = vadd.f32 %v1246, 1e-05
  %v1263 = vadd.f32 %v1247, 1e-05
  %v1264 = vadd.f32 %v1248, 1e-05
  %v1265 = vadd.f32 %v1249, 1e-05
  %v1266 = vadd.f32 %v1250, 1e-05
  %v1267 = vadd.f32 %v1251, 1e-05
  %v1268 = vadd.f32 %v1252, 1e-05
  %v1269 = vadd.f32 %v1253, 1e-05
  %v1270 = vadd.f32 %v1254, 1e-05
  %v1271 = vadd.f32 %v1255, 1e-05
  %v1272 = vadd.f32 %v1256, 1e-05
  %v1273 = vadd.f32 %v1257, 1e-05
  %v1274 = vadd.f32 %v1258, 1e-05
  %v1275 = vadd.f32 %v1259, 1e-05
  %v1276 = vadd.f32 %v1260, 1e-05
  %v1277 = vadd.f32 %v1261, 1e-05
  %v1278 = vrsqrt.pop %v1262
  %v1279 = vrsqrt.pop %v1263
  %v1280 = vrsqrt.pop %v1264
  %v1281 = vrsqrt.pop %v1265
  %v1282 = vrsqrt.pop %v1266
  %v1283 = vrsqrt.pop %v1267
  %v1284 = vrsqrt.pop %v1268
  %v1285 = vrsqrt.pop %v1269
  %v1286 = vrsqrt.pop %v1270
  %v1287 = vrsqrt.pop %v1271
  %v1288 = vrsqrt.pop %v1272
  %v1289 = vrsqrt.pop %v1273
  %v1290 = vrsqrt.pop %v1274
  %v1291 = vrsqrt.pop %v1275
  %v1292 = vrsqrt.pop %v1276
  %v1293 = vrsqrt.pop %v1277
  %v1294 = vmul.f32 %v1166, %v1278
  %v1295 = vmul.f32 %v1167, %v1279
  %v1296 = vmul.f32 %v1168, %v1280
  %v1297 = vmul.f32 %v1169, %v1281
  %v1298 = vmul.f32 %v1170, %v1282
  %v1299 = vmul.f32 %v1171, %v1283
  %v1300 = vmul.f32 %v1172, %v1284
  %v1301 = vmul.f32 %v1173, %v1285
  %v1302 = vmul.f32 %v1174, %v1286
  %v1303 = vmul.f32 %v1175, %v1287
  %v1304 = vmul.f32 %v1176, %v1288
  %v1305 = vmul.f32 %v1177, %v1289
  %v1306 = vmul.f32 %v1178, %v1290
  %v1307 = vmul.f32 %v1179, %v1291
  %v1308 = vmul.f32 %v1180, %v1292
  %v1309 = vmul.f32 %v1181, %v1293
  %v1310 = vld [vmem:[%s5 + $0x1] sm:$0x1]
  %v1311 = vlaneseq
  %v1312 = vshrl.u32 %v1311, 7
  %v1313 = vsub.s32 0, %v1312
  %v1314 = vrot.slane %v1310, %v1313
  %v1315 = vmul.f32 %v1294, %v1314
  %v1316 = vmul.f32 %v1295, %v1314
  %v1317 = vmul.f32 %v1296, %v1314
  %v1318 = vmul.f32 %v1297, %v1314
  %v1319 = vmul.f32 %v1298, %v1314
  %v1320 = vmul.f32 %v1299, %v1314
  %v1321 = vmul.f32 %v1300, %v1314
  %v1322 = vmul.f32 %v1301, %v1314
  %v1323 = vmul.f32 %v1302, %v1314
  %v1324 = vmul.f32 %v1303, %v1314
  %v1325 = vmul.f32 %v1304, %v1314
  %v1326 = vmul.f32 %v1305, %v1314
  %v1327 = vmul.f32 %v1306, %v1314
  %v1328 = vmul.f32 %v1307, %v1314
  %v1329 = vmul.f32 %v1308, %v1314
  %v1330 = vmul.f32 %v1309, %v1314
  %v1331 = vld [vmem:[%s6 + $0x1] sm:$0x1]
  %v1332 = vlaneseq
  %v1333 = vshrl.u32 %v1332, 7
  %v1334 = vsub.s32 0, %v1333
  %v1335 = vrot.slane %v1331, %v1334
  %v1336 = vadd.f32 %v1315, %v1335
  %v1337 = vadd.f32 %v1316, %v1335
  %v1338 = vadd.f32 %v1317, %v1335
  %v1339 = vadd.f32 %v1318, %v1335
  %v1340 = vadd.f32 %v1319, %v1335
  %v1341 = vadd.f32 %v1320, %v1335
  %v1342 = vadd.f32 %v1321, %v1335
  %v1343 = vadd.f32 %v1322, %v1335
  %v1344 = vadd.f32 %v1323, %v1335
  %v1345 = vadd.f32 %v1324, %v1335
  %v1346 = vadd.f32 %v1325, %v1335
  %v1347 = vadd.f32 %v1326, %v1335
  %v1348 = vadd.f32 %v1327, %v1335
  %v1349 = vadd.f32 %v1328, %v1335
  %v1350 = vadd.f32 %v1329, %v1335
  %v1351 = vadd.f32 %v1330, %v1335
  %v1352 = vunpack.c.l.bf16 %v797
  %v1353 = vunpack.c.h.bf16 %v797
  %v1354 = vunpack.c.l.bf16 %v798
  %v1355 = vunpack.c.h.bf16 %v798
  %v1356 = vunpack.c.l.bf16 %v799
  %v1357 = vunpack.c.h.bf16 %v799
  %v1358 = vunpack.c.l.bf16 %v800
  %v1359 = vunpack.c.h.bf16 %v800
  %v1360 = vunpack.c.l.bf16 %v801
  %v1361 = vunpack.c.h.bf16 %v801
  %v1362 = vunpack.c.l.bf16 %v802
  %v1363 = vunpack.c.h.bf16 %v802
  %v1364 = vunpack.c.l.bf16 %v803
  %v1365 = vunpack.c.h.bf16 %v803
  %v1366 = vunpack.c.l.bf16 %v804
  %v1367 = vunpack.c.h.bf16 %v804
  %v1368 = vadd.f32 %v1336, %v1352
  %v1369 = vadd.f32 %v1337, %v1353
  %v1370 = vadd.f32 %v1338, %v1354
  %v1371 = vadd.f32 %v1339, %v1355
  %v1372 = vadd.f32 %v1340, %v1356
  %v1373 = vadd.f32 %v1341, %v1357
  %v1374 = vadd.f32 %v1342, %v1358
  %v1375 = vadd.f32 %v1343, %v1359
  %v1376 = vadd.f32 %v1344, %v1360
  %v1377 = vadd.f32 %v1345, %v1361
  %v1378 = vadd.f32 %v1346, %v1362
  %v1379 = vadd.f32 %v1347, %v1363
  %v1380 = vadd.f32 %v1348, %v1364
  %v1381 = vadd.f32 %v1349, %v1365
  %v1382 = vadd.f32 %v1350, %v1366
  %v1383 = vadd.f32 %v1351, %v1367
  %v1384 = vmax.f32 %v1368, 0.0
  %v1385 = vmax.f32 %v1369, 0.0
  %v1386 = vmax.f32 %v1370, 0.0
  %v1387 = vmax.f32 %v1371, 0.0
  %v1388 = vmax.f32 %v1372, 0.0
  %v1389 = vmax.f32 %v1373, 0.0
  %v1390 = vmax.f32 %v1374, 0.0
  %v1391 = vmax.f32 %v1375, 0.0
  %v1392 = vmax.f32 %v1376, 0.0
  %v1393 = vmax.f32 %v1377, 0.0
  %v1394 = vmax.f32 %v1378, 0.0
  %v1395 = vmax.f32 %v1379, 0.0
  %v1396 = vmax.f32 %v1380, 0.0
  %v1397 = vmax.f32 %v1381, 0.0
  %v1398 = vmax.f32 %v1382, 0.0
  %v1399 = vmax.f32 %v1383, 0.0
  %v1400 = vpack.c.bf16 %v1385, %v1384
  %v1401 = vpack.c.bf16 %v1387, %v1386
  %v1402 = vpack.c.bf16 %v1389, %v1388
  %v1403 = vpack.c.bf16 %v1391, %v1390
  %v1404 = vpack.c.bf16 %v1393, %v1392
  %v1405 = vpack.c.bf16 %v1395, %v1394
  %v1406 = vpack.c.bf16 %v1397, %v1396
  %v1407 = vpack.c.bf16 %v1399, %v1398
  %v1408 = vld [vmem:[%s7] sm:$0x1]
  %v1409 = vunpack.c.l.bf16 %v1400
  %v1410 = vunpack.c.h.bf16 %v1400
  %v1411 = vunpack.c.l.bf16 %v1401
  %v1412 = vunpack.c.h.bf16 %v1401
  %v1413 = vunpack.c.l.bf16 %v1402
  %v1414 = vunpack.c.h.bf16 %v1402
  %v1415 = vunpack.c.l.bf16 %v1403
  %v1416 = vunpack.c.h.bf16 %v1403
  %v1417 = vunpack.c.l.bf16 %v1404
  %v1418 = vunpack.c.h.bf16 %v1404
  %v1419 = vunpack.c.l.bf16 %v1405
  %v1420 = vunpack.c.h.bf16 %v1405
  %v1421 = vunpack.c.l.bf16 %v1406
  %v1422 = vunpack.c.h.bf16 %v1406
  %v1423 = vunpack.c.l.bf16 %v1407
  %v1424 = vunpack.c.h.bf16 %v1407
  %v1426 = vlaneseq
  %v1427 = vshrl.u32 %v1426, 7
  %v1428 = vsub.s32 0, %v1427
  %v1429 = vrot.slane %v1408, %v1428
  %v1431 = vmul.f32 %v1409, %v1429
  %v1432 = vmul.f32 %v1410, %v1429
  %v1433 = vmul.f32 %v1411, %v1429
  %v1434 = vmul.f32 %v1412, %v1429
  %v1435 = vmul.f32 %v1413, %v1429
  %v1436 = vmul.f32 %v1414, %v1429
  %v1437 = vmul.f32 %v1415, %v1429
  %v1438 = vmul.f32 %v1416, %v1429
  %v1439 = vmul.f32 %v1417, %v1429
  %v1440 = vmul.f32 %v1418, %v1429
  %v1441 = vmul.f32 %v1419, %v1429
  %v1442 = vmul.f32 %v1420, %v1429
  %v1443 = vmul.f32 %v1421, %v1429
  %v1444 = vmul.f32 %v1422, %v1429
  %v1445 = vmul.f32 %v1423, %v1429
  %v1446 = vmul.f32 %v1424, %v1429
  %v1447 = vsel %vm449, %v1431, 0.0
  %1448 = vadd.xlane.f32.xlu0 %v1447
  %v1449 = vpop.xlane.xlu0 %1448
  %v1450 = vsel %vm449, %v1432, 0.0
  %1451 = vadd.xlane.f32.xlu0 %v1450
  %v1452 = vpop.xlane.xlu0 %1451
  %v1453 = vsel %vm449, %v1433, 0.0
  %1454 = vadd.xlane.f32.xlu0 %v1453
  %v1455 = vpop.xlane.xlu0 %1454
  %v1456 = vsel %vm449, %v1434, 0.0
  %1457 = vadd.xlane.f32.xlu0 %v1456
  %v1458 = vpop.xlane.xlu0 %1457
  %v1459 = vsel %vm449, %v1435, 0.0
  %1460 = vadd.xlane.f32.xlu0 %v1459
  %v1461 = vpop.xlane.xlu0 %1460
  %v1462 = vsel %vm449, %v1436, 0.0
  %1463 = vadd.xlane.f32.xlu0 %v1462
  %v1464 = vpop.xlane.xlu0 %1463
  %v1465 = vsel %vm449, %v1437, 0.0
  %1466 = vadd.xlane.f32.xlu0 %v1465
  %v1467 = vpop.xlane.xlu0 %1466
  %v1468 = vsel %vm449, %v1438, 0.0
  %1469 = vadd.xlane.f32.xlu0 %v1468
  %v1470 = vpop.xlane.xlu0 %1469
  %v1471 = vsel %vm449, %v1439, 0.0
  %1472 = vadd.xlane.f32.xlu0 %v1471
  %v1473 = vpop.xlane.xlu0 %1472
  %v1474 = vsel %vm449, %v1440, 0.0
  %1475 = vadd.xlane.f32.xlu0 %v1474
  %v1476 = vpop.xlane.xlu0 %1475
  %v1477 = vsel %vm449, %v1441, 0.0
  %1478 = vadd.xlane.f32.xlu0 %v1477
  %v1479 = vpop.xlane.xlu0 %1478
  %v1480 = vsel %vm449, %v1442, 0.0
  %1481 = vadd.xlane.f32.xlu0 %v1480
  %v1482 = vpop.xlane.xlu0 %1481
  %v1483 = vsel %vm449, %v1443, 0.0
  %1484 = vadd.xlane.f32.xlu0 %v1483
  %v1485 = vpop.xlane.xlu0 %1484
  %v1486 = vsel %vm449, %v1444, 0.0
  %1487 = vadd.xlane.f32.xlu0 %v1486
  %v1488 = vpop.xlane.xlu0 %1487
  %v1489 = vsel %vm449, %v1445, 0.0
  %1490 = vadd.xlane.f32.xlu0 %v1489
  %v1491 = vpop.xlane.xlu0 %1490
  %v1492 = vsel %vm449, %v1446, 0.0
  %1493 = vadd.xlane.f32.xlu0 %v1492
  %v1494 = vpop.xlane.xlu0 %1493
  %v1495 = vld [vmem:[#allocation2] sm:$0x1]
  %v1497 = vlaneseq
  %v1498 = vshrl.u32 %v1497, 7
  %v1499 = vsub.s32 0, %v1498
  %v1500 = vrot.slane %v1495, %v1499
  %v1502 = vadd.f32 %v1449, %v1500
  %v1503 = vadd.f32 %v1452, %v1500
  %v1504 = vadd.f32 %v1455, %v1500
  %v1505 = vadd.f32 %v1458, %v1500
  %v1506 = vadd.f32 %v1461, %v1500
  %v1507 = vadd.f32 %v1464, %v1500
  %v1508 = vadd.f32 %v1467, %v1500
  %v1509 = vadd.f32 %v1470, %v1500
  %v1510 = vadd.f32 %v1473, %v1500
  %v1511 = vadd.f32 %v1476, %v1500
  %v1512 = vadd.f32 %v1479, %v1500
  %v1513 = vadd.f32 %v1482, %v1500
  %v1514 = vadd.f32 %v1485, %v1500
  %v1515 = vadd.f32 %v1488, %v1500
  %v1516 = vadd.f32 %v1491, %v1500
  %v1517 = vadd.f32 %v1494, %v1500
  %vm1518 = vcmask 7168
  %v1519 = vsel %vm1518, %v1502, -inf
  %v1520 = vsel %vm1518, %v1503, -inf
  %v1521 = vmax.f32 %v1519, %v1520
  %v1522 = vrot.slane %v1521, 4
  %v1523 = vmax.f32 %v1521, %v1522
  %v1524 = vrot.slane %v1523, 2
  %v1525 = vmax.f32 %v1523, %v1524
  %v1526 = vrot.slane %v1525, 1
  %v1527 = vmax.f32 %v1525, %v1526
  %v1528 = vsel %vm1518, %v1504, -inf
  %v1529 = vsel %vm1518, %v1505, -inf
  %v1530 = vmax.f32 %v1528, %v1529
  %v1531 = vrot.slane %v1530, 4
  %v1532 = vmax.f32 %v1530, %v1531
  %v1533 = vrot.slane %v1532, 2
  %v1534 = vmax.f32 %v1532, %v1533
  %v1535 = vrot.slane %v1534, 1
  %v1536 = vmax.f32 %v1534, %v1535
  %v1537 = vsel %vm1518, %v1506, -inf
  %v1538 = vsel %vm1518, %v1507, -inf
  %v1539 = vmax.f32 %v1537, %v1538
  %v1540 = vrot.slane %v1539, 4
  %v1541 = vmax.f32 %v1539, %v1540
  %v1542 = vrot.slane %v1541, 2
  %v1543 = vmax.f32 %v1541, %v1542
  %v1544 = vrot.slane %v1543, 1
  %v1545 = vmax.f32 %v1543, %v1544
  %v1546 = vsel %vm1518, %v1508, -inf
  %v1547 = vsel %vm1518, %v1509, -inf
  %v1548 = vmax.f32 %v1546, %v1547
  %v1549 = vrot.slane %v1548, 4
  %v1550 = vmax.f32 %v1548, %v1549
  %v1551 = vrot.slane %v1550, 2
  %v1552 = vmax.f32 %v1550, %v1551
  %v1553 = vrot.slane %v1552, 1
  %v1554 = vmax.f32 %v1552, %v1553
  %v1555 = vsel %vm1518, %v1510, -inf
  %v1556 = vsel %vm1518, %v1511, -inf
  %v1557 = vmax.f32 %v1555, %v1556
  %v1558 = vrot.slane %v1557, 4
  %v1559 = vmax.f32 %v1557, %v1558
  %v1560 = vrot.slane %v1559, 2
  %v1561 = vmax.f32 %v1559, %v1560
  %v1562 = vrot.slane %v1561, 1
  %v1563 = vmax.f32 %v1561, %v1562
  %v1564 = vsel %vm1518, %v1512, -inf
  %v1565 = vsel %vm1518, %v1513, -inf
  %v1566 = vmax.f32 %v1564, %v1565
  %v1567 = vrot.slane %v1566, 4
  %v1568 = vmax.f32 %v1566, %v1567
  %v1569 = vrot.slane %v1568, 2
  %v1570 = vmax.f32 %v1568, %v1569
  %v1571 = vrot.slane %v1570, 1
  %v1572 = vmax.f32 %v1570, %v1571
  %v1573 = vsel %vm1518, %v1514, -inf
  %v1574 = vsel %vm1518, %v1515, -inf
  %v1575 = vmax.f32 %v1573, %v1574
  %v1576 = vrot.slane %v1575, 4
  %v1577 = vmax.f32 %v1575, %v1576
  %v1578 = vrot.slane %v1577, 2
  %v1579 = vmax.f32 %v1577, %v1578
  %v1580 = vrot.slane %v1579, 1
  %v1581 = vmax.f32 %v1579, %v1580
  %v1582 = vsel %vm1518, %v1516, -inf
  %v1583 = vsel %vm1518, %v1517, -inf
  %v1584 = vmax.f32 %v1582, %v1583
  %v1585 = vrot.slane %v1584, 4
  %v1586 = vmax.f32 %v1584, %v1585
  %v1587 = vrot.slane %v1586, 2
  %v1588 = vmax.f32 %v1586, %v1587
  %v1589 = vrot.slane %v1588, 1
  %v1590 = vmax.f32 %v1588, %v1589
  %v1591 = vsub.f32 %v1502, %v1527
  %v1592 = vsub.f32 %v1503, %v1527
  %v1593 = vsub.f32 %v1504, %v1536
  %v1594 = vsub.f32 %v1505, %v1536
  %v1595 = vsub.f32 %v1506, %v1545
  %v1596 = vsub.f32 %v1507, %v1545
  %v1597 = vsub.f32 %v1508, %v1554
  %v1598 = vsub.f32 %v1509, %v1554
  %v1599 = vsub.f32 %v1510, %v1563
  %v1600 = vsub.f32 %v1511, %v1563
  %v1601 = vsub.f32 %v1512, %v1572
  %v1602 = vsub.f32 %v1513, %v1572
  %v1603 = vsub.f32 %v1514, %v1581
  %v1604 = vsub.f32 %v1515, %v1581
  %v1605 = vsub.f32 %v1516, %v1590
  %v1606 = vsub.f32 %v1517, %v1590
  %v1607 = vmul.f32 %v1591, 1.442695
  %v1608 = vpow.pop %v1607
  %v1609 = vmul.f32 %v1592, 1.442695
  %v1610 = vpow.pop %v1609
  %v1611 = vmul.f32 %v1593, 1.442695
  %v1612 = vpow.pop %v1611
  %v1613 = vmul.f32 %v1594, 1.442695
  %v1614 = vpow.pop %v1613
  %v1615 = vmul.f32 %v1595, 1.442695
  %v1616 = vpow.pop %v1615
  %v1617 = vmul.f32 %v1596, 1.442695
  %v1618 = vpow.pop %v1617
  %v1619 = vmul.f32 %v1597, 1.442695
  %v1620 = vpow.pop %v1619
  %v1621 = vmul.f32 %v1598, 1.442695
  %v1622 = vpow.pop %v1621
  %v1623 = vmul.f32 %v1599, 1.442695
  %v1624 = vpow.pop %v1623
  %v1625 = vmul.f32 %v1600, 1.442695
  %v1626 = vpow.pop %v1625
  %v1627 = vmul.f32 %v1601, 1.442695
  %v1628 = vpow.pop %v1627
  %v1629 = vmul.f32 %v1602, 1.442695
  %v1630 = vpow.pop %v1629
  %v1631 = vmul.f32 %v1603, 1.442695
  %v1632 = vpow.pop %v1631
  %v1633 = vmul.f32 %v1604, 1.442695
  %v1634 = vpow.pop %v1633
  %v1635 = vmul.f32 %v1605, 1.442695
  %v1636 = vpow.pop %v1635
  %v1637 = vmul.f32 %v1606, 1.442695
  %v1638 = vpow.pop %v1637
  %v1639 = vsel %vm1518, %v1608, 0.0
  %v1640 = vsel %vm1518, %v1610, 0.0
  %v1641 = vadd.f32 %v1639, %v1640
  %v1642 = vrot.slane %v1641, 4
  %v1643 = vadd.f32 %v1641, %v1642
  %v1644 = vrot.slane %v1643, 2
  %v1645 = vadd.f32 %v1643, %v1644
  %v1646 = vrot.slane %v1645, 1
  %v1647 = vadd.f32 %v1645, %v1646
  %v1648 = vsel %vm1518, %v1612, 0.0
  %v1649 = vsel %vm1518, %v1614, 0.0
  %v1650 = vadd.f32 %v1648, %v1649
  %v1651 = vrot.slane %v1650, 4
  %v1652 = vadd.f32 %v1650, %v1651
  %v1653 = vrot.slane %v1652, 2
  %v1654 = vadd.f32 %v1652, %v1653
  %v1655 = vrot.slane %v1654, 1
  %v1656 = vadd.f32 %v1654, %v1655
  %v1657 = vsel %vm1518, %v1616, 0.0
  %v1658 = vsel %vm1518, %v1618, 0.0
  %v1659 = vadd.f32 %v1657, %v1658
  %v1660 = vrot.slane %v1659, 4
  %v1661 = vadd.f32 %v1659, %v1660
  %v1662 = vrot.slane %v1661, 2
  %v1663 = vadd.f32 %v1661, %v1662
  %v1664 = vrot.slane %v1663, 1
  %v1665 = vadd.f32 %v1663, %v1664
  %v1666 = vsel %vm1518, %v1620, 0.0
  %v1667 = vsel %vm1518, %v1622, 0.0
  %v1668 = vadd.f32 %v1666, %v1667
  %v1669 = vrot.slane %v1668, 4
  %v1670 = vadd.f32 %v1668, %v1669
  %v1671 = vrot.slane %v1670, 2
  %v1672 = vadd.f32 %v1670, %v1671
  %v1673 = vrot.slane %v1672, 1
  %v1674 = vadd.f32 %v1672, %v1673
  %v1675 = vsel %vm1518, %v1624, 0.0
  %v1676 = vsel %vm1518, %v1626, 0.0
  %v1677 = vadd.f32 %v1675, %v1676
  %v1678 = vrot.slane %v1677, 4
  %v1679 = vadd.f32 %v1677, %v1678
  %v1680 = vrot.slane %v1679, 2
  %v1681 = vadd.f32 %v1679, %v1680
  %v1682 = vrot.slane %v1681, 1
  %v1683 = vadd.f32 %v1681, %v1682
  %v1684 = vsel %vm1518, %v1628, 0.0
  %v1685 = vsel %vm1518, %v1630, 0.0
  %v1686 = vadd.f32 %v1684, %v1685
  %v1687 = vrot.slane %v1686, 4
  %v1688 = vadd.f32 %v1686, %v1687
  %v1689 = vrot.slane %v1688, 2
  %v1690 = vadd.f32 %v1688, %v1689
  %v1691 = vrot.slane %v1690, 1
  %v1692 = vadd.f32 %v1690, %v1691
  %v1693 = vsel %vm1518, %v1632, 0.0
  %v1694 = vsel %vm1518, %v1634, 0.0
  %v1695 = vadd.f32 %v1693, %v1694
  %v1696 = vrot.slane %v1695, 4
  %v1697 = vadd.f32 %v1695, %v1696
  %v1698 = vrot.slane %v1697, 2
  %v1699 = vadd.f32 %v1697, %v1698
  %v1700 = vrot.slane %v1699, 1
  %v1701 = vadd.f32 %v1699, %v1700
  %v1702 = vsel %vm1518, %v1636, 0.0
  %v1703 = vsel %vm1518, %v1638, 0.0
  %v1704 = vadd.f32 %v1702, %v1703
  %v1705 = vrot.slane %v1704, 4
  %v1706 = vadd.f32 %v1704, %v1705
  %v1707 = vrot.slane %v1706, 2
  %v1708 = vadd.f32 %v1706, %v1707
  %v1709 = vrot.slane %v1708, 1
  %v1710 = vadd.f32 %v1708, %v1709
  %v1711 = vrcp.pop %v1647
  %v1712 = vrcp.pop %v1656
  %v1713 = vrcp.pop %v1665
  %v1714 = vrcp.pop %v1674
  %v1715 = vrcp.pop %v1683
  %v1716 = vrcp.pop %v1692
  %v1717 = vrcp.pop %v1701
  %v1718 = vrcp.pop %v1710
  %v1719 = vmul.f32 %v1608, %v1711
  %v1720 = vmul.f32 %v1610, %v1711
  %v1721 = vmul.f32 %v1612, %v1712
  %v1722 = vmul.f32 %v1614, %v1712
  %v1723 = vmul.f32 %v1616, %v1713
  %v1724 = vmul.f32 %v1618, %v1713
  %v1725 = vmul.f32 %v1620, %v1714
  %v1726 = vmul.f32 %v1622, %v1714
  %v1727 = vmul.f32 %v1624, %v1715
  %v1728 = vmul.f32 %v1626, %v1715
  %v1729 = vmul.f32 %v1628, %v1716
  %v1730 = vmul.f32 %v1630, %v1716
  %v1731 = vmul.f32 %v1632, %v1717
  %v1732 = vmul.f32 %v1634, %v1717
  %v1733 = vmul.f32 %v1636, %v1718
  %v1734 = vmul.f32 %v1638, %v1718
  %1736 = vset.pattern.permute.xlu0 0
  %1737 = vperm.xlu0 %1736, %v1719
  %v1738 = vpop.permute.xlu0 %1737
  %1741 = vset.pattern.permute.xlu0 0
  %1742 = vperm.xlu0 %1741, %v1720
  %v1743 = vpop.permute.xlu0 %1742
  %1746 = vset.pattern.permute.xlu0 0
  %1747 = vperm.xlu0 %1746, %v1721
  %v1748 = vpop.permute.xlu0 %1747
  %1751 = vset.pattern.permute.xlu0 0
  %1752 = vperm.xlu0 %1751, %v1722
  %v1753 = vpop.permute.xlu0 %1752
  %1756 = vset.pattern.permute.xlu0 0
  %1757 = vperm.xlu0 %1756, %v1723
  %v1758 = vpop.permute.xlu0 %1757
  %1761 = vset.pattern.permute.xlu0 0
  %1762 = vperm.xlu0 %1761, %v1724
  %v1763 = vpop.permute.xlu0 %1762
  %1766 = vset.pattern.permute.xlu0 0
  %1767 = vperm.xlu0 %1766, %v1725
  %v1768 = vpop.permute.xlu0 %1767
  %1771 = vset.pattern.permute.xlu0 0
  %1772 = vperm.xlu0 %1771, %v1726
  %v1773 = vpop.permute.xlu0 %1772
  %1776 = vset.pattern.permute.xlu0 0
  %1777 = vperm.xlu0 %1776, %v1727
  %v1778 = vpop.permute.xlu0 %1777
  %1781 = vset.pattern.permute.xlu0 0
  %1782 = vperm.xlu0 %1781, %v1728
  %v1783 = vpop.permute.xlu0 %1782
  %1786 = vset.pattern.permute.xlu0 0
  %1787 = vperm.xlu0 %1786, %v1729
  %v1788 = vpop.permute.xlu0 %1787
  %1791 = vset.pattern.permute.xlu0 0
  %1792 = vperm.xlu0 %1791, %v1730
  %v1793 = vpop.permute.xlu0 %1792
  %1796 = vset.pattern.permute.xlu0 0
  %1797 = vperm.xlu0 %1796, %v1731
  %v1798 = vpop.permute.xlu0 %1797
  %1801 = vset.pattern.permute.xlu0 0
  %1802 = vperm.xlu0 %1801, %v1732
  %v1803 = vpop.permute.xlu0 %1802
  %1806 = vset.pattern.permute.xlu0 0
  %1807 = vperm.xlu0 %1806, %v1733
  %v1808 = vpop.permute.xlu0 %1807
  %1811 = vset.pattern.permute.xlu0 0
  %1812 = vperm.xlu0 %1811, %v1734
  %v1813 = vpop.permute.xlu0 %1812
  %v1815 = vmul.f32 %v1409, %v1738
  %v1816 = vmul.f32 %v1410, %v1743
  %v1817 = vmul.f32 %v1411, %v1748
  %v1818 = vmul.f32 %v1412, %v1753
  %v1819 = vmul.f32 %v1413, %v1758
  %v1820 = vmul.f32 %v1414, %v1763
  %v1821 = vmul.f32 %v1415, %v1768
  %v1822 = vmul.f32 %v1416, %v1773
  %v1823 = vmul.f32 %v1417, %v1778
  %v1824 = vmul.f32 %v1418, %v1783
  %v1825 = vmul.f32 %v1419, %v1788
  %v1826 = vmul.f32 %v1420, %v1793
  %v1827 = vmul.f32 %v1421, %v1798
  %v1828 = vmul.f32 %v1422, %v1803
  %v1829 = vmul.f32 %v1423, %v1808
  %v1830 = vmul.f32 %v1424, %v1813
  %v1831 = vsel %vm449, %v1815, 0.0
  %v1832 = vsel %vm449, %v1816, 0.0
  %v1833 = vadd.f32 %v1831, %v1832
  %v1834 = vrot.slane %v1833, 4
  %v1835 = vadd.f32 %v1833, %v1834
  %v1836 = vrot.slane %v1835, 2
  %v1837 = vadd.f32 %v1835, %v1836
  %v1838 = vrot.slane %v1837, 1
  %v1839 = vadd.f32 %v1837, %v1838
  %v1840 = vsel %vm449, %v1817, 0.0
  %v1841 = vsel %vm449, %v1818, 0.0
  %v1842 = vadd.f32 %v1840, %v1841
  %v1843 = vrot.slane %v1842, 4
  %v1844 = vadd.f32 %v1842, %v1843
  %v1845 = vrot.slane %v1844, 2
  %v1846 = vadd.f32 %v1844, %v1845
  %v1847 = vrot.slane %v1846, 1
  %v1848 = vadd.f32 %v1846, %v1847
  %v1849 = vsel %vm449, %v1819, 0.0
  %v1850 = vsel %vm449, %v1820, 0.0
  %v1851 = vadd.f32 %v1849, %v1850
  %v1852 = vrot.slane %v1851, 4
  %v1853 = vadd.f32 %v1851, %v1852
  %v1854 = vrot.slane %v1853, 2
  %v1855 = vadd.f32 %v1853, %v1854
  %v1856 = vrot.slane %v1855, 1
  %v1857 = vadd.f32 %v1855, %v1856
  %v1858 = vsel %vm449, %v1821, 0.0
  %v1859 = vsel %vm449, %v1822, 0.0
  %v1860 = vadd.f32 %v1858, %v1859
  %v1861 = vrot.slane %v1860, 4
  %v1862 = vadd.f32 %v1860, %v1861
  %v1863 = vrot.slane %v1862, 2
  %v1864 = vadd.f32 %v1862, %v1863
  %v1865 = vrot.slane %v1864, 1
  %v1866 = vadd.f32 %v1864, %v1865
  %v1867 = vsel %vm449, %v1823, 0.0
  %v1868 = vsel %vm449, %v1824, 0.0
  %v1869 = vadd.f32 %v1867, %v1868
  %v1870 = vrot.slane %v1869, 4
  %v1871 = vadd.f32 %v1869, %v1870
  %v1872 = vrot.slane %v1871, 2
  %v1873 = vadd.f32 %v1871, %v1872
  %v1874 = vrot.slane %v1873, 1
  %v1875 = vadd.f32 %v1873, %v1874
  %v1876 = vsel %vm449, %v1825, 0.0
  %v1877 = vsel %vm449, %v1826, 0.0
  %v1878 = vadd.f32 %v1876, %v1877
  %v1879 = vrot.slane %v1878, 4
  %v1880 = vadd.f32 %v1878, %v1879
  %v1881 = vrot.slane %v1880, 2
  %v1882 = vadd.f32 %v1880, %v1881
  %v1883 = vrot.slane %v1882, 1
  %v1884 = vadd.f32 %v1882, %v1883
  %v1885 = vsel %vm449, %v1827, 0.0
  %v1886 = vsel %vm449, %v1828, 0.0
  %v1887 = vadd.f32 %v1885, %v1886
  %v1888 = vrot.slane %v1887, 4
  %v1889 = vadd.f32 %v1887, %v1888
  %v1890 = vrot.slane %v1889, 2
  %v1891 = vadd.f32 %v1889, %v1890
  %v1892 = vrot.slane %v1891, 1
  %v1893 = vadd.f32 %v1891, %v1892
  %v1894 = vsel %vm449, %v1829, 0.0
  %v1895 = vsel %vm449, %v1830, 0.0
  %v1896 = vadd.f32 %v1894, %v1895
  %v1897 = vrot.slane %v1896, 4
  %v1898 = vadd.f32 %v1896, %v1897
  %v1899 = vrot.slane %v1898, 2
  %v1900 = vadd.f32 %v1898, %v1899
  %v1901 = vrot.slane %v1900, 1
  %v1902 = vadd.f32 %v1900, %v1901
  %vm1911 = vcmask 1041409
  %v1912 = vsel %vm1911, %v1848, %v1839
  %vm1913 = vcmask 1042434
  %v1914 = vsel %vm1913, %v1857, %v1912
  %vm1915 = vcmask 1043459
  %v1916 = vsel %vm1915, %v1866, %v1914
  %vm1917 = vcmask 1044484
  %v1918 = vsel %vm1917, %v1875, %v1916
  %vm1919 = vcmask 1045509
  %v1920 = vsel %vm1919, %v1884, %v1918
  %vm1921 = vcmask 1046534
  %v1922 = vsel %vm1921, %v1893, %v1920
  %vm1923 = vcmask 1047559
  %v1924 = vsel %vm1923, %v1902, %v1922
  %v1926 = vsel %vm449, %v1924, 0.0
  %1927 = vadd.xlane.f32.xlu0 %v1926
  %v1928 = vpop.xlane.xlu0 %1927
  %v1929 = vmul.f32 %v1928, %v498
  %v1931 = vrot.slane %v1929, 1
  %v1932 = vrot.slane %v1929, 2
  %v1933 = vrot.slane %v1929, 3
  %v1934 = vrot.slane %v1929, 4
  %v1935 = vrot.slane %v1929, 5
  %v1936 = vrot.slane %v1929, 6
  %v1937 = vrot.slane %v1929, 7
  %v1946 = vsub.f32 %v1839, %v1929
  %v1947 = vsub.f32 %v1848, %v1931
  %v1948 = vsub.f32 %v1857, %v1932
  %v1949 = vsub.f32 %v1866, %v1933
  %v1950 = vsub.f32 %v1875, %v1934
  %v1951 = vsub.f32 %v1884, %v1935
  %v1952 = vsub.f32 %v1893, %v1936
  %v1953 = vsub.f32 %v1902, %v1937
  %v1954 = vmul.f32 %v1946, %v1946
  %v1955 = vmul.f32 %v1947, %v1947
  %v1956 = vmul.f32 %v1948, %v1948
  %v1957 = vmul.f32 %v1949, %v1949
  %v1958 = vmul.f32 %v1950, %v1950
  %v1959 = vmul.f32 %v1951, %v1951
  %v1960 = vmul.f32 %v1952, %v1952
  %v1961 = vmul.f32 %v1953, %v1953
  %v1970 = vrot.slane %v1955, 7
  %v1971 = vsel %vm1911, %v1970, %v1954
  %v1972 = vrot.slane %v1956, 6
  %v1973 = vsel %vm1913, %v1972, %v1971
  %v1974 = vrot.slane %v1957, 5
  %v1975 = vsel %vm1915, %v1974, %v1973
  %v1976 = vrot.slane %v1958, 4
  %v1977 = vsel %vm1917, %v1976, %v1975
  %v1978 = vrot.slane %v1959, 3
  %v1979 = vsel %vm1919, %v1978, %v1977
  %v1980 = vrot.slane %v1960, 2
  %v1981 = vsel %vm1921, %v1980, %v1979
  %v1982 = vrot.slane %v1961, 1
  %v1983 = vsel %vm1923, %v1982, %v1981
  %v1985 = vsel %vm449, %v1983, 0.0
  %1986 = vadd.xlane.f32.xlu0 %v1985
  %v1987 = vpop.xlane.xlu0 %1986
  %v1988 = vmul.f32 %v1987, %v498
  %v1989 = vadd.f32 %v1988, 1e-05
  %v1990 = vrsqrt.pop %v1989
  %v1992 = vrot.slane %v1990, 1
  %v1993 = vrot.slane %v1990, 2
  %v1994 = vrot.slane %v1990, 3
  %v1995 = vrot.slane %v1990, 4
  %v1996 = vrot.slane %v1990, 5
  %v1997 = vrot.slane %v1990, 6
  %v1998 = vrot.slane %v1990, 7
  %v2007 = vmul.f32 %v1946, %v1990
  %v2008 = vmul.f32 %v1947, %v1992
  %v2009 = vmul.f32 %v1948, %v1993
  %v2010 = vmul.f32 %v1949, %v1994
  %v2011 = vmul.f32 %v1950, %v1995
  %v2012 = vmul.f32 %v1951, %v1996
  %v2013 = vmul.f32 %v1952, %v1997
  %v2014 = vmul.f32 %v1953, %v1998
  %v2015 = vld [vmem:[%s9] sm:$0x1]
  %v2017 = vlaneseq
  %v2018 = vshrl.u32 %v2017, 7
  %v2019 = vsub.s32 0, %v2018
  %v2020 = vrot.slane %v2015, %v2019
  %v2022 = vmul.f32 %v2007, %v2020
  %v2023 = vmul.f32 %v2008, %v2020
  %v2024 = vmul.f32 %v2009, %v2020
  %v2025 = vmul.f32 %v2010, %v2020
  %v2026 = vmul.f32 %v2011, %v2020
  %v2027 = vmul.f32 %v2012, %v2020
  %v2028 = vmul.f32 %v2013, %v2020
  %v2029 = vmul.f32 %v2014, %v2020
  %v2030 = vld [vmem:[%s10] sm:$0x1]
  %v2032 = vlaneseq
  %v2033 = vshrl.u32 %v2032, 7
  %v2034 = vsub.s32 0, %v2033
  %v2035 = vrot.slane %v2030, %v2034
  %v2037 = vadd.f32 %v2022, %v2035
  %v2038 = vadd.f32 %v2023, %v2035
  %v2039 = vadd.f32 %v2024, %v2035
  %v2040 = vadd.f32 %v2025, %v2035
  %v2041 = vadd.f32 %v2026, %v2035
  %v2042 = vadd.f32 %v2027, %v2035
  %v2043 = vadd.f32 %v2028, %v2035
  %v2044 = vadd.f32 %v2029, %v2035
  %v2045 = vld [vmem:[%s11] sm:$0x1]
  %v2046 = vlaneseq
  %v2047 = vshrl.u32 %v2046, 7
  %v2048 = vsub.s32 0, %v2047
  %v2049 = vrot.slane %v2045, %v2048
  %v2050 = vmul.f32 %v2037, %v2049
  %v2051 = vmul.f32 %v2038, %v2049
  %v2052 = vmul.f32 %v2039, %v2049
  %v2053 = vmul.f32 %v2040, %v2049
  %v2054 = vmul.f32 %v2041, %v2049
  %v2055 = vmul.f32 %v2042, %v2049
  %v2056 = vmul.f32 %v2043, %v2049
  %v2057 = vmul.f32 %v2044, %v2049
  %v2066 = vrot.slane %v2051, 7
  %v2067 = vsel %vm1911, %v2066, %v2050
  %v2068 = vrot.slane %v2052, 6
  %v2069 = vsel %vm1913, %v2068, %v2067
  %v2070 = vrot.slane %v2053, 5
  %v2071 = vsel %vm1915, %v2070, %v2069
  %v2072 = vrot.slane %v2054, 4
  %v2073 = vsel %vm1917, %v2072, %v2071
  %v2074 = vrot.slane %v2055, 3
  %v2075 = vsel %vm1919, %v2074, %v2073
  %v2076 = vrot.slane %v2056, 2
  %v2077 = vsel %vm1921, %v2076, %v2075
  %v2078 = vrot.slane %v2057, 1
  %v2079 = vsel %vm1923, %v2078, %v2077
  %v2081 = vsel %vm449, %v2079, 0.0
  %2082 = vadd.xlane.f32.xlu0 %v2081
  %v2083 = vpop.xlane.xlu0 %2082
  %v2084 = vld [vmem:[%s11 + $0x1] sm:$0x1]
  %v2085 = vlaneseq
  %v2086 = vshrl.u32 %v2085, 7
  %v2087 = vsub.s32 0, %v2086
  %v2088 = vrot.slane %v2084, %v2087
  %v2089 = vmul.f32 %v2037, %v2088
  %v2090 = vmul.f32 %v2038, %v2088
  %v2091 = vmul.f32 %v2039, %v2088
  %v2092 = vmul.f32 %v2040, %v2088
  %v2093 = vmul.f32 %v2041, %v2088
  %v2094 = vmul.f32 %v2042, %v2088
  %v2095 = vmul.f32 %v2043, %v2088
  %v2096 = vmul.f32 %v2044, %v2088
  %v2105 = vrot.slane %v2090, 7
  %v2106 = vsel %vm1911, %v2105, %v2089
  %v2107 = vrot.slane %v2091, 6
  %v2108 = vsel %vm1913, %v2107, %v2106
  %v2109 = vrot.slane %v2092, 5
  %v2110 = vsel %vm1915, %v2109, %v2108
  %v2111 = vrot.slane %v2093, 4
  %v2112 = vsel %vm1917, %v2111, %v2110
  %v2113 = vrot.slane %v2094, 3
  %v2114 = vsel %vm1919, %v2113, %v2112
  %v2115 = vrot.slane %v2095, 2
  %v2116 = vsel %vm1921, %v2115, %v2114
  %v2117 = vrot.slane %v2096, 1
  %v2118 = vsel %vm1923, %v2117, %v2116
  %v2120 = vsel %vm449, %v2118, 0.0
  %2121 = vadd.xlane.f32.xlu0 %v2120
  %v2122 = vpop.xlane.xlu0 %2121
  %v2123 = vld [vmem:[%s11 + $0x2] sm:$0x1]
  %v2124 = vlaneseq
  %v2125 = vshrl.u32 %v2124, 7
  %v2126 = vsub.s32 0, %v2125
  %v2127 = vrot.slane %v2123, %v2126
  %v2128 = vmul.f32 %v2037, %v2127
  %v2129 = vmul.f32 %v2038, %v2127
  %v2130 = vmul.f32 %v2039, %v2127
  %v2131 = vmul.f32 %v2040, %v2127
  %v2132 = vmul.f32 %v2041, %v2127
  %v2133 = vmul.f32 %v2042, %v2127
  %v2134 = vmul.f32 %v2043, %v2127
  %v2135 = vmul.f32 %v2044, %v2127
  %v2144 = vrot.slane %v2129, 7
  %v2145 = vsel %vm1911, %v2144, %v2128
  %v2146 = vrot.slane %v2130, 6
  %v2147 = vsel %vm1913, %v2146, %v2145
  %v2148 = vrot.slane %v2131, 5
  %v2149 = vsel %vm1915, %v2148, %v2147
  %v2150 = vrot.slane %v2132, 4
  %v2151 = vsel %vm1917, %v2150, %v2149
  %v2152 = vrot.slane %v2133, 3
  %v2153 = vsel %vm1919, %v2152, %v2151
  %v2154 = vrot.slane %v2134, 2
  %v2155 = vsel %vm1921, %v2154, %v2153
  %v2156 = vrot.slane %v2135, 1
  %v2157 = vsel %vm1923, %v2156, %v2155
  %v2159 = vsel %vm449, %v2157, 0.0
  %2160 = vadd.xlane.f32.xlu0 %v2159
  %v2161 = vpop.xlane.xlu0 %2160
  %v2162 = vsel %vm1518, %v2083, %v2122
  %vm2163 = vcmask 15360
  %v2164 = vsel %vm2163, %v2162, %v2161
  %v2165 = vld [vmem:[%s12] sm:$0x1]
  %v2167 = vlaneseq
  %v2168 = vshrl.u32 %v2167, 7
  %v2169 = vsub.s32 0, %v2168
  %v2170 = vrot.slane %v2165, %v2169
  %v2172 = vadd.f32 %v2164, %v2170
  %vm2173 = vcmask 23552
  %2174 = vst.msk [vmem:[%s13] sm:$0xff] %vm2173, %v2172
  // Predicated region
  $region54: #{tcn_forward.1} parent=0 // pred_check
    _
  $region55: #{tcn_forward.1} parent=0 // pred_check_branch
    %2176 = sbr.rel (0) target = $region57
  $region56: #{tcn_forward.1} parent=0 // pred_region
    _
  $region57: #{tcn_forward.1} parent=0 // pred_fallthru
    _
  // Predicated region
  $region58: #{tcn_forward.1} parent=0 // pred_check
    _
  $region59: #{tcn_forward.1} parent=0 // pred_check_branch
    %2178 = sbr.rel (0) target = $region61
  $region60: #{tcn_forward.1} parent=0 // pred_region
    _
  $region61: #{tcn_forward.1} parent=0 // pred_fallthru
    _

</llo_original>
